<compile_context>
chip_gen: v7x
topology: tpu7x:2x2x1
jax: 0.10.0
libtpu: 0.0.40
codegen_flags: <defaults>
</compile_context>

<pallas_src>
import functools

import jax
import jax.numpy as jnp
from jax import lax
from jax.experimental import pallas as pl
from jax.experimental.pallas import tpu as pltpu


# ----------------------------- fused LSTM + heads kernel -----------------------------
def _lstm_head_kernel(lastt_ref, x_ref, wih_ref, whh_ref, b_ref, wh_ref, bh_ref,
                      out_ref, *, T, H):
    """Fused LSTM recurrence + final-state select + two linear heads + sigmoid(0.2*x).

    lastt_ref: (B,)      int32 in SMEM (scalar prefetch), seq_len - 1 per row
    x_ref:     (T*B, E)  time-major padded input, f32, one dense VMEM slab
    wih_ref:   (E, 4H)   W_ih^T, PyTorch gate order [i|f|g|o]
    whh_ref:   (H, 4H)   W_hh^T
    b_ref:     (1, 4H)   b_ih + b_hh
    wh_ref:    (H, 2)    [w_user^T | w_sys^T]
    bh_ref:    (1, 2)    [b_user | b_sys]
    out_ref:   (B, 2)    sigmoid(0.2 * (h_last @ wh + bh))
    """
    B = out_ref.shape[0]

    # Hoisted input projection: ONE MXU call covers all T timesteps, with the
    # LSTM bias folded in here (off the recurrence critical path).
    x_proj = (
        jnp.dot(x_ref[...], wih_ref[...], preferred_element_type=jnp.float32)
        + b_ref[...]
    )                                                       # (T*B, 4H)

    whh = whh_ref[...]                                      # (H, 4H), loaded once

    # Build the (B, 1) "last valid timestep" vector once from SMEM scalars.
    batch_iota = lax.broadcasted_iota(jnp.int32, (B, 1), 0)
    last_t = jnp.zeros((B, 1), jnp.int32)
    for b in range(B):
        last_t = jnp.where(batch_iota == b, lastt_ref[b], last_t)

    h = jnp.zeros((B, H), jnp.float32)
    c = jnp.zeros((B, H), jnp.float32)
    h_last = jnp.zeros((B, H), jnp.float32)

    # Time recurrence, fully unrolled (T small). Per step: 1 MXU feed (K=H),
    # 3 EUP pushes (sigmoid, tanh(gates), tanh(c)), and a handful of VPU ops.
    for t in range(T):
        xp = x_proj[t * B:(t + 1) * B, :]                   # static (B, 4H) slice
        gates = xp + jnp.dot(h, whh, preferred_element_type=jnp.float32)
        sig = jax.nn.sigmoid(gates)                         # one EUP pass, whole tile
        tnh = jnp.tanh(gates)                               # one EUP pass, whole tile
        i_g = sig[:, 0 * H:1 * H]
        f_g = sig[:, 1 * H:2 * H]
        o_g = sig[:, 3 * H:4 * H]
        g_g = tnh[:, 2 * H:3 * H]
        c = f_g * c + i_g * g_g
        h = o_g * jnp.tanh(c)
        # Packed-sequence semantics: keep the hidden state at t == seq_len - 1.
        h_last = jnp.where(last_t == t, h, h_last)

    # Fused heads: (B,H) @ (H,2) + (1,2), then sigmoid(0.2 * logits).
    logits = jnp.dot(h_last, wh_ref[...], preferred_element_type=jnp.float32) + bh_ref[...]
    out_ref[...] = jax.nn.sigmoid(logits * jnp.float32(0.2))


# ----------------------------- module forward wrapper -----------------------------
def learned_al_sampling_lstm_classifier(params, x_tbe, seq_lengths):
    """Forward pass matching LearnedALSamplingLSTMClassifier.

    x_tbe:       (T, B, E) time-major padded batch (the packed sequence, padded).
    seq_lengths: (B,) int valid lengths (>= 1).
    Returns (user_obj_predictions, system_obj_predictions), each (B, 1) float32.
    """
    T, B, E = x_tbe.shape
    fourH, H = params["w_hh"].shape
    assert fourH == 4 * H

    # Tiny weight-prep XLA ops (constant-folded under jit with fixed params).
    wih_t = jnp.transpose(params["w_ih"]).astype(jnp.float32)                 # (E, 4H)
    whh_t = jnp.transpose(params["w_hh"]).astype(jnp.float32)                 # (H, 4H)
    bias = (params["b_ih"] + params["b_hh"]).reshape(1, 4 * H).astype(jnp.float32)
    w_head = jnp.transpose(
        jnp.concatenate([params["w_user"], params["w_sys"]], axis=0)
    ).astype(jnp.float32)                                                     # (H, 2)
    b_head = jnp.concatenate(
        [params["b_user"], params["b_sys"]], axis=0
    ).reshape(1, 2).astype(jnp.float32)                                       # (1, 2)
    last_t = seq_lengths.astype(jnp.int32) - 1                                # (B,) -> SMEM
    x2d = x_tbe.astype(jnp.float32).reshape(T * B, E)                         # time-major slab

    kernel = functools.partial(_lstm_head_kernel, T=T, H=H)

    preds = pl.pallas_call(
        kernel,
        out_shape=jax.ShapeDtypeStruct((B, 2), jnp.float32),
        grid_spec=pltpu.PrefetchScalarGridSpec(
            num_scalar_prefetch=1,                  # last_t lives in SMEM
            grid=(1,),
            in_specs=[
                pl.BlockSpec((T * B, E), lambda i, lastt: (0, 0)),       # x, 2-D slab
                pl.BlockSpec((E, 4 * H), lambda i, lastt: (0, 0)),       # W_ih^T
                pl.BlockSpec((H, 4 * H), lambda i, lastt: (0, 0)),       # W_hh^T
                pl.BlockSpec((1, 4 * H), lambda i, lastt: (0, 0)),       # fused LSTM bias
                pl.BlockSpec((H, 2), lambda i, lastt: (0, 0)),           # head weights
                pl.BlockSpec((1, 2), lambda i, lastt: (0, 0)),           # head bias
            ],
            out_specs=pl.BlockSpec((B, 2), lambda i, lastt: (0, 0)),
        ),
        compiler_params=pltpu.CompilerParams(
            dimension_semantics=("arbitrary",),
        ),
    )(last_t, x2d, wih_t, whh_t, bias, w_head, b_head)

    user_obj_predictions = preds[:, 0:1]
    system_obj_predictions = preds[:, 1:2]
    return user_obj_predictions, system_obj_predictions


# ----------------------------- pure-JAX reference (for correctness check) -----------------------------
def _reference_forward(params, x_tbe, seq_lengths):
    T, B, E = x_tbe.shape
    H = params["w_hh"].shape[1]
    wih_t = params["w_ih"].T
    whh_t = params["w_hh"].T
    b = params["b_ih"] + params["b_hh"]
    h = jnp.zeros((B, H), jnp.float32)
    c = jnp.zeros((B, H), jnp.float32)
    hs = []
    for t in range(T):
        gates = x_tbe[t] @ wih_t + h @ whh_t + b
        i_g = jax.nn.sigmoid(gates[:, :H])
        f_g = jax.nn.sigmoid(gates[:, H:2 * H])
        g_g = jnp.tanh(gates[:, 2 * H:3 * H])
        o_g = jax.nn.sigmoid(gates[:, 3 * H:])
        c = f_g * c + i_g * g_g
        h = o_g * jnp.tanh(c)
        hs.append(h)
    hs = jnp.stack(hs, axis=0)                               # (T, B, H)
    h_last = hs[seq_lengths - 1, jnp.arange(B)]              # (B, H)
    u = jax.nn.sigmoid(0.2 * (h_last @ params["w_user"].T + params["b_user"]))
    s = jax.nn.sigmoid(0.2 * (h_last @ params["w_sys"].T + params["b_sys"]))
    return u, s


# ----------------------------- deterministic parameter init -----------------------------
def init_params(key, embedding_dim, hidden_dim):
    H, E = hidden_dim, embedding_dim
    k = jax.random.split(key, 8)
    s_lstm = 1.0 / jnp.sqrt(H)
    s_lin = 1.0 / jnp.sqrt(H)
    u = lambda kk, shape, s: jax.random.uniform(kk, shape, jnp.float32, -s, s)
    return {
        "w_ih": u(k[0], (4 * H, E), s_lstm),
        "w_hh": u(k[1], (4 * H, H), s_lstm),
        "b_ih": u(k[2], (4 * H,), s_lstm),
        "b_hh": u(k[3], (4 * H,), s_lstm),
        "w_user": u(k[4], (1, H), s_lin),
        "b_user": u(k[5], (1,), s_lin),
        "w_sys": u(k[6], (1, H), s_lin),
        "b_sys": u(k[7], (1,), s_lin),
    }


if __name__ == "__main__":
    embedding_dim = 16
    hidden_dim = 32
    B, T = 2, 8

    key = jax.random.PRNGKey(0)
    k_params, k_x = jax.random.split(key)
    params = init_params(k_params, embedding_dim, hidden_dim)

    # Time-major padded batch (T, B, E), ragged lengths like a packed batch.
    x_tbe = jax.random.normal(k_x, (T, B, embedding_dim), dtype=jnp.float32)
    seq_lengths = jnp.array([T, 5], dtype=jnp.int32)

    user_pred, sys_pred = learned_al_sampling_lstm_classifier(params, x_tbe, seq_lengths)
    jax.block_until_ready((user_pred, sys_pred))

    assert user_pred.shape == (B, 1) and sys_pred.shape == (B, 1)
    assert bool(jnp.all(jnp.isfinite(user_pred))) and bool(jnp.all(jnp.isfinite(sys_pred)))

    # Numerical check against a pure-JAX reference of the same module math.
    u_ref, s_ref = _reference_forward(params, x_tbe, seq_lengths)
    assert bool(jnp.allclose(user_pred, u_ref, rtol=1e-5, atol=1e-5))
    assert bool(jnp.allclose(sys_pred, s_ref, rtol=1e-5, atol=1e-5))

    print("KERNEL_OK")
</pallas_src>

<mosaic_0001>
module attributes {stable_mosaic.version = 11 : i64} {
  func.func @_lstm_head_kernel(%arg0: i32, %arg1: memref<2xi32, #tpu.memory_space<smem>>, %arg2: memref<16x16xf32, #tpu.memory_space<vmem>>, %arg3: memref<16x128xf32, #tpu.memory_space<vmem>>, %arg4: memref<32x128xf32, #tpu.memory_space<vmem>>, %arg5: memref<1x128xf32, #tpu.memory_space<vmem>>, %arg6: memref<32x2xf32, #tpu.memory_space<vmem>>, %arg7: memref<1x2xf32, #tpu.memory_space<vmem>>, %arg8: memref<2x2xf32, #tpu.memory_space<vmem>>) attributes {dimension_semantics = [#tpu.dimension_semantics<arbitrary>], iteration_bounds = array<i64: 1>, scalar_prefetch = 1 : i64, scratch_operands = 0 : i64, tpu.core_type = #tpu.core_type<tc>, window_params = [{pipeline_mode = #tpu.pipeline_mode<synchronous>, transform_indices = @transform_0, window_bounds = array<i64: 16, 16>}, {pipeline_mode = #tpu.pipeline_mode<synchronous>, transform_indices = @transform_1, window_bounds = array<i64: 16, 128>}, {pipeline_mode = #tpu.pipeline_mode<synchronous>, transform_indices = @transform_2, window_bounds = array<i64: 32, 128>}, {pipeline_mode = #tpu.pipeline_mode<synchronous>, transform_indices = @transform_3, window_bounds = array<i64: 1, 128>}, {pipeline_mode = #tpu.pipeline_mode<synchronous>, transform_indices = @transform_4, window_bounds = array<i64: 32, 2>}, {pipeline_mode = #tpu.pipeline_mode<synchronous>, transform_indices = @transform_5, window_bounds = array<i64: 1, 2>}, {pipeline_mode = #tpu.pipeline_mode<synchronous>, transform_indices = @transform_6, window_bounds = array<i64: 2, 2>}]} {
    %c0 = arith.constant 0 : index
    %c0_0 = arith.constant 0 : index
    %0 = vector.load %arg2[%c0, %c0_0] : memref<16x16xf32, #tpu.memory_space<vmem>>, vector<16x16xf32>
    %c0_1 = arith.constant 0 : index
    %c0_2 = arith.constant 0 : index
    %1 = vector.load %arg3[%c0_1, %c0_2] : memref<16x128xf32, #tpu.memory_space<vmem>>, vector<16x128xf32>
    %cst = arith.constant dense<0.000000e+00> : vector<16x128xf32>
    %2 = tpu.matmul %0, %1, %cst {dimension_numbers = #tpu.dot_dimension_numbers<[1], [0], [0], [1], [0, 0, 1, 1], [], []>} : vector<16x16xf32>, vector<16x128xf32>, vector<16x128xf32> -> vector<16x128xf32>
    %c0_3 = arith.constant 0 : index
    %c0_4 = arith.constant 0 : index
    %3 = vector.load %arg5[%c0_3, %c0_4] : memref<1x128xf32, #tpu.memory_space<vmem>>, vector<1x128xf32>
    %4 = vector.broadcast %3 : vector<1x128xf32> to vector<16x128xf32>
    %5 = arith.addf %2, %4 : vector<16x128xf32>
    %c0_5 = arith.constant 0 : index
    %c0_6 = arith.constant 0 : index
    %6 = vector.load %arg4[%c0_5, %c0_6] : memref<32x128xf32, #tpu.memory_space<vmem>>, vector<32x128xf32>
    %7 = tpu.iota {dimensions = array<i32: 0>} : vector<2x1xi32>
    %c0_i32 = arith.constant 0 : i32
    %8 = vector.broadcast %c0_i32 : i32 to vector<2x1xi32>
    %c0_i32_7 = arith.constant 0 : i32
    %9 = vector.broadcast %c0_i32_7 : i32 to vector<2x1xi32>
    %10 = arith.cmpi eq, %7, %9 : vector<2x1xi32>
    %c0_8 = arith.constant 0 : index
    %11 = memref.load %arg1[%c0_8] : memref<2xi32, #tpu.memory_space<smem>>
    %12 = vector.broadcast %11 : i32 to vector<2x1xi32>
    %13 = arith.select %10, %12, %8 : vector<2x1xi1>, vector<2x1xi32>
    %c1_i32 = arith.constant 1 : i32
    %14 = vector.broadcast %c1_i32 : i32 to vector<2x1xi32>
    %15 = arith.cmpi eq, %7, %14 : vector<2x1xi32>
    %c1 = arith.constant 1 : index
    %16 = memref.load %arg1[%c1] : memref<2xi32, #tpu.memory_space<smem>>
    %17 = vector.broadcast %16 : i32 to vector<2x1xi32>
    %18 = arith.select %15, %17, %13 : vector<2x1xi1>, vector<2x1xi32>
    %cst_9 = arith.constant 0.000000e+00 : f32
    %19 = vector.broadcast %cst_9 : f32 to vector<2x32xf32>
    %cst_10 = arith.constant 0.000000e+00 : f32
    %20 = vector.broadcast %cst_10 : f32 to vector<2x32xf32>
    %cst_11 = arith.constant 0.000000e+00 : f32
    %21 = vector.broadcast %cst_11 : f32 to vector<2x32xf32>
    %22 = vector.extract_strided_slice %5 {offsets = [0, 0], sizes = [2, 128], strides = [1, 1]} : vector<16x128xf32> to vector<2x128xf32>
    %cst_12 = arith.constant dense<0.000000e+00> : vector<2x128xf32>
    %23 = tpu.matmul %19, %6, %cst_12 {dimension_numbers = #tpu.dot_dimension_numbers<[1], [0], [0], [1], [0, 0, 1, 1], [], []>} : vector<2x32xf32>, vector<32x128xf32>, vector<2x128xf32> -> vector<2x128xf32>
    %24 = arith.addf %22, %23 : vector<2x128xf32>
    %25 = arith.negf %24 : vector<2x128xf32>
    %26 = math.exp %25 : vector<2x128xf32>
    %cst_13 = arith.constant 1.000000e+00 : f32
    %27 = vector.broadcast %cst_13 : f32 to vector<2x128xf32>
    %28 = arith.addf %27, %26 : vector<2x128xf32>
    %29 = arith.divf %27, %28 : vector<2x128xf32>
    %30 = math.tanh %24 : vector<2x128xf32>
    %31 = vector.extract_strided_slice %29 {offsets = [0, 0], sizes = [2, 32], strides = [1, 1]} : vector<2x128xf32> to vector<2x32xf32>
    %32 = vector.extract_strided_slice %29 {offsets = [0, 32], sizes = [2, 32], strides = [1, 1]} : vector<2x128xf32> to vector<2x32xf32>
    %33 = vector.extract_strided_slice %29 {offsets = [0, 96], sizes = [2, 32], strides = [1, 1]} : vector<2x128xf32> to vector<2x32xf32>
    %34 = vector.extract_strided_slice %30 {offsets = [0, 64], sizes = [2, 32], strides = [1, 1]} : vector<2x128xf32> to vector<2x32xf32>
    %35 = arith.mulf %32, %20 : vector<2x32xf32>
    %36 = arith.mulf %31, %34 : vector<2x32xf32>
    %37 = arith.addf %35, %36 : vector<2x32xf32>
    %38 = math.tanh %37 : vector<2x32xf32>
    %39 = arith.mulf %33, %38 : vector<2x32xf32>
    %c0_i32_14 = arith.constant 0 : i32
    %40 = vector.broadcast %c0_i32_14 : i32 to vector<2x1xi32>
    %41 = arith.cmpi eq, %18, %40 : vector<2x1xi32>
    %42 = vector.shape_cast %41 : vector<2x1xi1> to vector<2x1xi1>
    %43 = vector.broadcast %42 : vector<2x1xi1> to vector<2x32xi1>
    %44 = arith.select %43, %39, %21 : vector<2x32xi1>, vector<2x32xf32>
    %45 = vector.extract_strided_slice %5 {offsets = [2, 0], sizes = [2, 128], strides = [1, 1]} : vector<16x128xf32> to vector<2x128xf32>
    %cst_15 = arith.constant dense<0.000000e+00> : vector<2x128xf32>
    %46 = tpu.matmul %39, %6, %cst_15 {dimension_numbers = #tpu.dot_dimension_numbers<[1], [0], [0], [1], [0, 0, 1, 1], [], []>} : vector<2x32xf32>, vector<32x128xf32>, vector<2x128xf32> -> vector<2x128xf32>
    %47 = arith.addf %45, %46 : vector<2x128xf32>
    %48 = arith.negf %47 : vector<2x128xf32>
    %49 = math.exp %48 : vector<2x128xf32>
    %cst_16 = arith.constant 1.000000e+00 : f32
    %50 = vector.broadcast %cst_16 : f32 to vector<2x128xf32>
    %51 = arith.addf %50, %49 : vector<2x128xf32>
    %52 = arith.divf %50, %51 : vector<2x128xf32>
    %53 = math.tanh %47 : vector<2x128xf32>
    %54 = vector.extract_strided_slice %52 {offsets = [0, 0], sizes = [2, 32], strides = [1, 1]} : vector<2x128xf32> to vector<2x32xf32>
    %55 = vector.extract_strided_slice %52 {offsets = [0, 32], sizes = [2, 32], strides = [1, 1]} : vector<2x128xf32> to vector<2x32xf32>
    %56 = vector.extract_strided_slice %52 {offsets = [0, 96], sizes = [2, 32], strides = [1, 1]} : vector<2x128xf32> to vector<2x32xf32>
    %57 = vector.extract_strided_slice %53 {offsets = [0, 64], sizes = [2, 32], strides = [1, 1]} : vector<2x128xf32> to vector<2x32xf32>
    %58 = arith.mulf %55, %37 : vector<2x32xf32>
    %59 = arith.mulf %54, %57 : vector<2x32xf32>
    %60 = arith.addf %58, %59 : vector<2x32xf32>
    %61 = math.tanh %60 : vector<2x32xf32>
    %62 = arith.mulf %56, %61 : vector<2x32xf32>
    %c1_i32_17 = arith.constant 1 : i32
    %63 = vector.broadcast %c1_i32_17 : i32 to vector<2x1xi32>
    %64 = arith.cmpi eq, %18, %63 : vector<2x1xi32>
    %65 = vector.shape_cast %64 : vector<2x1xi1> to vector<2x1xi1>
    %66 = vector.broadcast %65 : vector<2x1xi1> to vector<2x32xi1>
    %67 = arith.select %66, %62, %44 : vector<2x32xi1>, vector<2x32xf32>
    %68 = vector.extract_strided_slice %5 {offsets = [4, 0], sizes = [2, 128], strides = [1, 1]} : vector<16x128xf32> to vector<2x128xf32>
    %cst_18 = arith.constant dense<0.000000e+00> : vector<2x128xf32>
    %69 = tpu.matmul %62, %6, %cst_18 {dimension_numbers = #tpu.dot_dimension_numbers<[1], [0], [0], [1], [0, 0, 1, 1], [], []>} : vector<2x32xf32>, vector<32x128xf32>, vector<2x128xf32> -> vector<2x128xf32>
    %70 = arith.addf %68, %69 : vector<2x128xf32>
    %71 = arith.negf %70 : vector<2x128xf32>
    %72 = math.exp %71 : vector<2x128xf32>
    %cst_19 = arith.constant 1.000000e+00 : f32
    %73 = vector.broadcast %cst_19 : f32 to vector<2x128xf32>
    %74 = arith.addf %73, %72 : vector<2x128xf32>
    %75 = arith.divf %73, %74 : vector<2x128xf32>
    %76 = math.tanh %70 : vector<2x128xf32>
    %77 = vector.extract_strided_slice %75 {offsets = [0, 0], sizes = [2, 32], strides = [1, 1]} : vector<2x128xf32> to vector<2x32xf32>
    %78 = vector.extract_strided_slice %75 {offsets = [0, 32], sizes = [2, 32], strides = [1, 1]} : vector<2x128xf32> to vector<2x32xf32>
    %79 = vector.extract_strided_slice %75 {offsets = [0, 96], sizes = [2, 32], strides = [1, 1]} : vector<2x128xf32> to vector<2x32xf32>
    %80 = vector.extract_strided_slice %76 {offsets = [0, 64], sizes = [2, 32], strides = [1, 1]} : vector<2x128xf32> to vector<2x32xf32>
    %81 = arith.mulf %78, %60 : vector<2x32xf32>
    %82 = arith.mulf %77, %80 : vector<2x32xf32>
    %83 = arith.addf %81, %82 : vector<2x32xf32>
    %84 = math.tanh %83 : vector<2x32xf32>
    %85 = arith.mulf %79, %84 : vector<2x32xf32>
    %c2_i32 = arith.constant 2 : i32
    %86 = vector.broadcast %c2_i32 : i32 to vector<2x1xi32>
    %87 = arith.cmpi eq, %18, %86 : vector<2x1xi32>
    %88 = vector.shape_cast %87 : vector<2x1xi1> to vector<2x1xi1>
    %89 = vector.broadcast %88 : vector<2x1xi1> to vector<2x32xi1>
    %90 = arith.select %89, %85, %67 : vector<2x32xi1>, vector<2x32xf32>
    %91 = vector.extract_strided_slice %5 {offsets = [6, 0], sizes = [2, 128], strides = [1, 1]} : vector<16x128xf32> to vector<2x128xf32>
    %cst_20 = arith.constant dense<0.000000e+00> : vector<2x128xf32>
    %92 = tpu.matmul %85, %6, %cst_20 {dimension_numbers = #tpu.dot_dimension_numbers<[1], [0], [0], [1], [0, 0, 1, 1], [], []>} : vector<2x32xf32>, vector<32x128xf32>, vector<2x128xf32> -> vector<2x128xf32>
    %93 = arith.addf %91, %92 : vector<2x128xf32>
    %94 = arith.negf %93 : vector<2x128xf32>
    %95 = math.exp %94 : vector<2x128xf32>
    %cst_21 = arith.constant 1.000000e+00 : f32
    %96 = vector.broadcast %cst_21 : f32 to vector<2x128xf32>
    %97 = arith.addf %96, %95 : vector<2x128xf32>
    %98 = arith.divf %96, %97 : vector<2x128xf32>
    %99 = math.tanh %93 : vector<2x128xf32>
    %100 = vector.extract_strided_slice %98 {offsets = [0, 0], sizes = [2, 32], strides = [1, 1]} : vector<2x128xf32> to vector<2x32xf32>
    %101 = vector.extract_strided_slice %98 {offsets = [0, 32], sizes = [2, 32], strides = [1, 1]} : vector<2x128xf32> to vector<2x32xf32>
    %102 = vector.extract_strided_slice %98 {offsets = [0, 96], sizes = [2, 32], strides = [1, 1]} : vector<2x128xf32> to vector<2x32xf32>
    %103 = vector.extract_strided_slice %99 {offsets = [0, 64], sizes = [2, 32], strides = [1, 1]} : vector<2x128xf32> to vector<2x32xf32>
    %104 = arith.mulf %101, %83 : vector<2x32xf32>
    %105 = arith.mulf %100, %103 : vector<2x32xf32>
    %106 = arith.addf %104, %105 : vector<2x32xf32>
    %107 = math.tanh %106 : vector<2x32xf32>
    %108 = arith.mulf %102, %107 : vector<2x32xf32>
    %c3_i32 = arith.constant 3 : i32
    %109 = vector.broadcast %c3_i32 : i32 to vector<2x1xi32>
    %110 = arith.cmpi eq, %18, %109 : vector<2x1xi32>
    %111 = vector.shape_cast %110 : vector<2x1xi1> to vector<2x1xi1>
    %112 = vector.broadcast %111 : vector<2x1xi1> to vector<2x32xi1>
    %113 = arith.select %112, %108, %90 : vector<2x32xi1>, vector<2x32xf32>
    %114 = vector.extract_strided_slice %5 {offsets = [8, 0], sizes = [2, 128], strides = [1, 1]} : vector<16x128xf32> to vector<2x128xf32>
    %cst_22 = arith.constant dense<0.000000e+00> : vector<2x128xf32>
    %115 = tpu.matmul %108, %6, %cst_22 {dimension_numbers = #tpu.dot_dimension_numbers<[1], [0], [0], [1], [0, 0, 1, 1], [], []>} : vector<2x32xf32>, vector<32x128xf32>, vector<2x128xf32> -> vector<2x128xf32>
    %116 = arith.addf %114, %115 : vector<2x128xf32>
    %117 = arith.negf %116 : vector<2x128xf32>
    %118 = math.exp %117 : vector<2x128xf32>
    %cst_23 = arith.constant 1.000000e+00 : f32
    %119 = vector.broadcast %cst_23 : f32 to vector<2x128xf32>
    %120 = arith.addf %119, %118 : vector<2x128xf32>
    %121 = arith.divf %119, %120 : vector<2x128xf32>
    %122 = math.tanh %116 : vector<2x128xf32>
    %123 = vector.extract_strided_slice %121 {offsets = [0, 0], sizes = [2, 32], strides = [1, 1]} : vector<2x128xf32> to vector<2x32xf32>
    %124 = vector.extract_strided_slice %121 {offsets = [0, 32], sizes = [2, 32], strides = [1, 1]} : vector<2x128xf32> to vector<2x32xf32>
    %125 = vector.extract_strided_slice %121 {offsets = [0, 96], sizes = [2, 32], strides = [1, 1]} : vector<2x128xf32> to vector<2x32xf32>
    %126 = vector.extract_strided_slice %122 {offsets = [0, 64], sizes = [2, 32], strides = [1, 1]} : vector<2x128xf32> to vector<2x32xf32>
    %127 = arith.mulf %124, %106 : vector<2x32xf32>
    %128 = arith.mulf %123, %126 : vector<2x32xf32>
    %129 = arith.addf %127, %128 : vector<2x32xf32>
    %130 = math.tanh %129 : vector<2x32xf32>
    %131 = arith.mulf %125, %130 : vector<2x32xf32>
    %c4_i32 = arith.constant 4 : i32
    %132 = vector.broadcast %c4_i32 : i32 to vector<2x1xi32>
    %133 = arith.cmpi eq, %18, %132 : vector<2x1xi32>
    %134 = vector.shape_cast %133 : vector<2x1xi1> to vector<2x1xi1>
    %135 = vector.broadcast %134 : vector<2x1xi1> to vector<2x32xi1>
    %136 = arith.select %135, %131, %113 : vector<2x32xi1>, vector<2x32xf32>
    %137 = vector.extract_strided_slice %5 {offsets = [10, 0], sizes = [2, 128], strides = [1, 1]} : vector<16x128xf32> to vector<2x128xf32>
    %cst_24 = arith.constant dense<0.000000e+00> : vector<2x128xf32>
    %138 = tpu.matmul %131, %6, %cst_24 {dimension_numbers = #tpu.dot_dimension_numbers<[1], [0], [0], [1], [0, 0, 1, 1], [], []>} : vector<2x32xf32>, vector<32x128xf32>, vector<2x128xf32> -> vector<2x128xf32>
    %139 = arith.addf %137, %138 : vector<2x128xf32>
    %140 = arith.negf %139 : vector<2x128xf32>
    %141 = math.exp %140 : vector<2x128xf32>
    %cst_25 = arith.constant 1.000000e+00 : f32
    %142 = vector.broadcast %cst_25 : f32 to vector<2x128xf32>
    %143 = arith.addf %142, %141 : vector<2x128xf32>
    %144 = arith.divf %142, %143 : vector<2x128xf32>
    %145 = math.tanh %139 : vector<2x128xf32>
    %146 = vector.extract_strided_slice %144 {offsets = [0, 0], sizes = [2, 32], strides = [1, 1]} : vector<2x128xf32> to vector<2x32xf32>
    %147 = vector.extract_strided_slice %144 {offsets = [0, 32], sizes = [2, 32], strides = [1, 1]} : vector<2x128xf32> to vector<2x32xf32>
    %148 = vector.extract_strided_slice %144 {offsets = [0, 96], sizes = [2, 32], strides = [1, 1]} : vector<2x128xf32> to vector<2x32xf32>
    %149 = vector.extract_strided_slice %145 {offsets = [0, 64], sizes = [2, 32], strides = [1, 1]} : vector<2x128xf32> to vector<2x32xf32>
    %150 = arith.mulf %147, %129 : vector<2x32xf32>
    %151 = arith.mulf %146, %149 : vector<2x32xf32>
    %152 = arith.addf %150, %151 : vector<2x32xf32>
    %153 = math.tanh %152 : vector<2x32xf32>
    %154 = arith.mulf %148, %153 : vector<2x32xf32>
    %c5_i32 = arith.constant 5 : i32
    %155 = vector.broadcast %c5_i32 : i32 to vector<2x1xi32>
    %156 = arith.cmpi eq, %18, %155 : vector<2x1xi32>
    %157 = vector.shape_cast %156 : vector<2x1xi1> to vector<2x1xi1>
    %158 = vector.broadcast %157 : vector<2x1xi1> to vector<2x32xi1>
    %159 = arith.select %158, %154, %136 : vector<2x32xi1>, vector<2x32xf32>
    %160 = vector.extract_strided_slice %5 {offsets = [12, 0], sizes = [2, 128], strides = [1, 1]} : vector<16x128xf32> to vector<2x128xf32>
    %cst_26 = arith.constant dense<0.000000e+00> : vector<2x128xf32>
    %161 = tpu.matmul %154, %6, %cst_26 {dimension_numbers = #tpu.dot_dimension_numbers<[1], [0], [0], [1], [0, 0, 1, 1], [], []>} : vector<2x32xf32>, vector<32x128xf32>, vector<2x128xf32> -> vector<2x128xf32>
    %162 = arith.addf %160, %161 : vector<2x128xf32>
    %163 = arith.negf %162 : vector<2x128xf32>
    %164 = math.exp %163 : vector<2x128xf32>
    %cst_27 = arith.constant 1.000000e+00 : f32
    %165 = vector.broadcast %cst_27 : f32 to vector<2x128xf32>
    %166 = arith.addf %165, %164 : vector<2x128xf32>
    %167 = arith.divf %165, %166 : vector<2x128xf32>
    %168 = math.tanh %162 : vector<2x128xf32>
    %169 = vector.extract_strided_slice %167 {offsets = [0, 0], sizes = [2, 32], strides = [1, 1]} : vector<2x128xf32> to vector<2x32xf32>
    %170 = vector.extract_strided_slice %167 {offsets = [0, 32], sizes = [2, 32], strides = [1, 1]} : vector<2x128xf32> to vector<2x32xf32>
    %171 = vector.extract_strided_slice %167 {offsets = [0, 96], sizes = [2, 32], strides = [1, 1]} : vector<2x128xf32> to vector<2x32xf32>
    %172 = vector.extract_strided_slice %168 {offsets = [0, 64], sizes = [2, 32], strides = [1, 1]} : vector<2x128xf32> to vector<2x32xf32>
    %173 = arith.mulf %170, %152 : vector<2x32xf32>
    %174 = arith.mulf %169, %172 : vector<2x32xf32>
    %175 = arith.addf %173, %174 : vector<2x32xf32>
    %176 = math.tanh %175 : vector<2x32xf32>
    %177 = arith.mulf %171, %176 : vector<2x32xf32>
    %c6_i32 = arith.constant 6 : i32
    %178 = vector.broadcast %c6_i32 : i32 to vector<2x1xi32>
    %179 = arith.cmpi eq, %18, %178 : vector<2x1xi32>
    %180 = vector.shape_cast %179 : vector<2x1xi1> to vector<2x1xi1>
    %181 = vector.broadcast %180 : vector<2x1xi1> to vector<2x32xi1>
    %182 = arith.select %181, %177, %159 : vector<2x32xi1>, vector<2x32xf32>
    %183 = vector.extract_strided_slice %5 {offsets = [14, 0], sizes = [2, 128], strides = [1, 1]} : vector<16x128xf32> to vector<2x128xf32>
    %cst_28 = arith.constant dense<0.000000e+00> : vector<2x128xf32>
    %184 = tpu.matmul %177, %6, %cst_28 {dimension_numbers = #tpu.dot_dimension_numbers<[1], [0], [0], [1], [0, 0, 1, 1], [], []>} : vector<2x32xf32>, vector<32x128xf32>, vector<2x128xf32> -> vector<2x128xf32>
    %185 = arith.addf %183, %184 : vector<2x128xf32>
    %186 = arith.negf %185 : vector<2x128xf32>
    %187 = math.exp %186 : vector<2x128xf32>
    %cst_29 = arith.constant 1.000000e+00 : f32
    %188 = vector.broadcast %cst_29 : f32 to vector<2x128xf32>
    %189 = arith.addf %188, %187 : vector<2x128xf32>
    %190 = arith.divf %188, %189 : vector<2x128xf32>
    %191 = math.tanh %185 : vector<2x128xf32>
    %192 = vector.extract_strided_slice %190 {offsets = [0, 0], sizes = [2, 32], strides = [1, 1]} : vector<2x128xf32> to vector<2x32xf32>
    %193 = vector.extract_strided_slice %190 {offsets = [0, 32], sizes = [2, 32], strides = [1, 1]} : vector<2x128xf32> to vector<2x32xf32>
    %194 = vector.extract_strided_slice %190 {offsets = [0, 96], sizes = [2, 32], strides = [1, 1]} : vector<2x128xf32> to vector<2x32xf32>
    %195 = vector.extract_strided_slice %191 {offsets = [0, 64], sizes = [2, 32], strides = [1, 1]} : vector<2x128xf32> to vector<2x32xf32>
    %196 = arith.mulf %193, %175 : vector<2x32xf32>
    %197 = arith.mulf %192, %195 : vector<2x32xf32>
    %198 = arith.addf %196, %197 : vector<2x32xf32>
    %199 = math.tanh %198 : vector<2x32xf32>
    %200 = arith.mulf %194, %199 : vector<2x32xf32>
    %c7_i32 = arith.constant 7 : i32
    %201 = vector.broadcast %c7_i32 : i32 to vector<2x1xi32>
    %202 = arith.cmpi eq, %18, %201 : vector<2x1xi32>
    %203 = vector.shape_cast %202 : vector<2x1xi1> to vector<2x1xi1>
    %204 = vector.broadcast %203 : vector<2x1xi1> to vector<2x32xi1>
    %205 = arith.select %204, %200, %182 : vector<2x32xi1>, vector<2x32xf32>
    %c0_30 = arith.constant 0 : index
    %c0_31 = arith.constant 0 : index
    %206 = vector.load %arg6[%c0_30, %c0_31] : memref<32x2xf32, #tpu.memory_space<vmem>>, vector<32x2xf32>
    %cst_32 = arith.constant dense<0.000000e+00> : vector<2x2xf32>
    %207 = tpu.matmul %205, %206, %cst_32 {dimension_numbers = #tpu.dot_dimension_numbers<[1], [0], [0], [1], [0, 0, 1, 1], [], []>} : vector<2x32xf32>, vector<32x2xf32>, vector<2x2xf32> -> vector<2x2xf32>
    %c0_33 = arith.constant 0 : index
    %c0_34 = arith.constant 0 : index
    %208 = vector.load %arg7[%c0_33, %c0_34] : memref<1x2xf32, #tpu.memory_space<vmem>>, vector<1x2xf32>
    %209 = vector.broadcast %208 : vector<1x2xf32> to vector<2x2xf32>
    %210 = arith.addf %207, %209 : vector<2x2xf32>
    %cst_35 = arith.constant 2.000000e-01 : f32
    %211 = vector.broadcast %cst_35 : f32 to vector<2x2xf32>
    %212 = arith.mulf %210, %211 : vector<2x2xf32>
    %213 = arith.negf %212 : vector<2x2xf32>
    %214 = math.exp %213 : vector<2x2xf32>
    %cst_36 = arith.constant 1.000000e+00 : f32
    %215 = vector.broadcast %cst_36 : f32 to vector<2x2xf32>
    %216 = arith.addf %215, %214 : vector<2x2xf32>
    %217 = arith.divf %215, %216 : vector<2x2xf32>
    %c0_37 = arith.constant 0 : index
    %c0_38 = arith.constant 0 : index
    %218 = vector.load %arg8[%c0_37, %c0_38] : memref<2x2xf32, #tpu.memory_space<vmem>>, vector<2x2xf32>
    tpu.vector_store %arg8[%c0_37, %c0_38], %217 {strides = array<i32>} : memref<2x2xf32, #tpu.memory_space<vmem>>, vector<2x2xf32>,
    return
  }
  func.func @transform_0(%arg0: i32, %arg1: memref<2xi32, #tpu.memory_space<smem>>) -> (i32, i32) {
    %c0_i32 = arith.constant 0 : i32
    %c0_i32_0 = arith.constant 0 : i32
    %c0_i32_1 = arith.constant 0 : i32
    return %c0_i32, %c0_i32_0 : i32, i32
  }
  func.func @transform_1(%arg0: i32, %arg1: memref<2xi32, #tpu.memory_space<smem>>) -> (i32, i32) {
    %c0_i32 = arith.constant 0 : i32
    %c0_i32_0 = arith.constant 0 : i32
    %c0_i32_1 = arith.constant 0 : i32
    return %c0_i32, %c0_i32_0 : i32, i32
  }
  func.func @transform_2(%arg0: i32, %arg1: memref<2xi32, #tpu.memory_space<smem>>) -> (i32, i32) {
    %c0_i32 = arith.constant 0 : i32
    %c0_i32_0 = arith.constant 0 : i32
    %c0_i32_1 = arith.constant 0 : i32
    return %c0_i32, %c0_i32_0 : i32, i32
  }
  func.func @transform_3(%arg0: i32, %arg1: memref<2xi32, #tpu.memory_space<smem>>) -> (i32, i32) {
    %c0_i32 = arith.constant 0 : i32
    %c0_i32_0 = arith.constant 0 : i32
    %c0_i32_1 = arith.constant 0 : i32
    return %c0_i32, %c0_i32_0 : i32, i32
  }
  func.func @transform_4(%arg0: i32, %arg1: memref<2xi32, #tpu.memory_space<smem>>) -> (i32, i32) {
    %c0_i32 = arith.constant 0 : i32
    %c0_i32_0 = arith.constant 0 : i32
    %c0_i32_1 = arith.constant 0 : i32
    return %c0_i32, %c0_i32_0 : i32, i32
  }
  func.func @transform_5(%arg0: i32, %arg1: memref<2xi32, #tpu.memory_space<smem>>) -> (i32, i32) {
    %c0_i32 = arith.constant 0 : i32
    %c0_i32_0 = arith.constant 0 : i32
    %c0_i32_1 = arith.constant 0 : i32
    return %c0_i32, %c0_i32_0 : i32, i32
  }
  func.func @transform_6(%arg0: i32, %arg1: memref<2xi32, #tpu.memory_space<smem>>) -> (i32, i32) {
    %c0_i32 = arith.constant 0 : i32
    %c0_i32_0 = arith.constant 0 : i32
    %c0_i32_1 = arith.constant 0 : i32
    return %c0_i32, %c0_i32_0 : i32, i32
  }
}

</mosaic_0001>

<llo_original>
// kernel: tpu_custom_call.1
$region0: #{tpu_custom_call.1}
  #allocation0 [shape = 'u32[]', space=smem, size = 0x4, offset = 0x4, fixed_abs, tag = 'smem constant byte address 0x4 - core index']
  #allocation1 [shape = 'u32[144,128]{1,0:T(1,128)}', space=vmem, size = 0x12000, scoped, tag = 'internal scratch']
  #allocation2 [shape = 's32[1]{0}', space=sflag, size = 0x4, scoped, tag = 'scoped memory for tpu_custom_call.1']
  #allocation3 [shape = 'u8[512]{0}', space=smem, size = 0x200, scoped, tag = 'prefetched SMEM operand 0']
  %s0 = inlined_call_operand.vmem [shape: s32[2], index: 0, kind: input, shape index: {}]
  %s1 = inlined_call_operand.hbm [shape: f32[16,16], index: 1, kind: input, shape index: {}]
  %s2 = inlined_call_operand.hbm [shape: f32[16,128], index: 2, kind: input, shape index: {}]
  %s3 = inlined_call_operand.vmem [shape: f32[32,128], index: 3, kind: input, shape index: {}]
  %s4 = inlined_call_operand.vmem [shape: f32[1,128], index: 4, kind: input, shape index: {}]
  %s5 = inlined_call_operand.vmem [shape: f32[32,2], index: 5, kind: input, shape index: {}]
  %s6 = inlined_call_operand.vmem [shape: f32[1,2], index: 6, kind: input, shape index: {}]
  %s7 = inlined_call_operand.hbm [shape: f32[2,2], index: 7, kind: output, shape index: {}]
  %s8 = sld [smem:[#allocation0]]
  $region42: #{tpu_custom_call.1} parent=0
    _
  %s10 = ssub.s32 1, %s8
  %s11 = scalar_select 0, %s10, %s8
  %s12 = sshll.u32 %s0, 4
  %s13 = int_to_ptr.vmem [resolvable:$true] %s12
  %15 = dma.vmem_to_smem %s13, 16, [#allocation3], [#allocation2]
  %16 = dma.done [#allocation2], 16
  %17 = sfence
  $region1: #{tpu_custom_call.1} parent=0
    #allocation4 [shape = 'u8[8192]{0}', space=vmem, size = 0x2000, scoped, tag = 'input window, operand 1, single buffered']
    #allocation5 [shape = 's32[1]{0}', space=sflag, size = 0x4, scoped, tag = 'scoped memory for tpu_custom_call.1']
    #allocation6 [shape = 's32[1]{0}', space=sflag, size = 0x4, scoped, tag = 'scoped memory for tpu_custom_call.1']
    #allocation7 [shape = 'u8[8192]{0}', space=vmem, size = 0x2000, scoped, tag = 'input window, operand 2, single buffered']
    #allocation8 [shape = 's32[1]{0}', space=sflag, size = 0x4, scoped, tag = 'scoped memory for tpu_custom_call.1']
    #allocation9 [shape = 'u8[1024]{0}', space=vmem, size = 0x400, scoped, tag = 'output window, operand 0, single buffered']
    %18 = vsyncpa [#allocation5], 0
    %19 = vsyncpa [#allocation8], 0
    %20 = vsyncpa [#allocation6], 0
    // Predicated region
    $region2: #{tpu_custom_call.1} parent=1 // pred_check
      _
    $region3: #{tpu_custom_call.1} parent=1 // pred_check_branch
      %22 = sbr.rel (0) target = $region5
    $region4: #{tpu_custom_call.1} parent=1 // pred_region
      %s24 = ssub.s32 256, 256
      %25 = vsyncadd [#allocation5], %s24
      %s26 = sshll.u32 [#allocation4], 4
      %s27 = int_to_ptr.vmem [resolvable:$true] %s26
      %32 = dma.hbm_to_vmem [thread:$0]  %s1, 256, %s27, [#allocation5], 128, 128, 8
    $region5: #{tpu_custom_call.1} parent=1 // pred_fallthru
      _
    // Predicated region
    $region6: #{tpu_custom_call.1} parent=1 // pred_check
      _
    $region7: #{tpu_custom_call.1} parent=1 // pred_check_branch
      %34 = sbr.rel (0) target = $region9
    $region8: #{tpu_custom_call.1} parent=1 // pred_region
      %s36 = ssub.s32 256, 256
      %37 = vsyncadd [#allocation8], %s36
      %s38 = sshll.u32 [#allocation7], 4
      %s39 = int_to_ptr.vmem [resolvable:$true] %s38
      %44 = dma.hbm_to_vmem [thread:$0]  %s2, 256, %s39, [#allocation8], 128, 128, 8
    $region9: #{tpu_custom_call.1} parent=1 // pred_fallthru
      _
    // Predicated region
    $region10: #{tpu_custom_call.1} parent=1 // pred_check
      _
    $region11: #{tpu_custom_call.1} parent=1 // pred_check_branch
      %46 = sbr.rel (0) target = $region13
    $region12: #{tpu_custom_call.1} parent=1 // pred_region
      _
    $region13: #{tpu_custom_call.1} parent=1 // pred_fallthru
      _
    // Predicated region
    $region14: #{tpu_custom_call.1} parent=1 // pred_check
      _
    $region15: #{tpu_custom_call.1} parent=1 // pred_check_branch
      %48 = sbr.rel (0) target = $region17
    $region16: #{tpu_custom_call.1} parent=1 // pred_region
      _
    $region17: #{tpu_custom_call.1} parent=1 // pred_fallthru
      _
    // Predicated region
    $region18: #{tpu_custom_call.1} parent=1 // pred_check
      _
    $region19: #{tpu_custom_call.1} parent=1 // pred_check_branch
      %50 = sbr.rel (0) target = $region21
    $region20: #{tpu_custom_call.1} parent=1 // pred_region
      _
    $region21: #{tpu_custom_call.1} parent=1 // pred_fallthru
      _
    // Predicated region
    $region22: #{tpu_custom_call.1} parent=1 // pred_check
      _
    $region23: #{tpu_custom_call.1} parent=1 // pred_check_branch
      %52 = sbr.rel (0) target = $region25
    $region24: #{tpu_custom_call.1} parent=1 // pred_region
      _
    $region25: #{tpu_custom_call.1} parent=1 // pred_fallthru
      _
    // Predicated region
    $region26: #{tpu_custom_call.1} parent=1 // pred_check
      _
    $region27: #{tpu_custom_call.1} parent=1 // pred_check_branch
      %54 = sbr.rel (0) target = $region29
    $region28: #{tpu_custom_call.1} parent=1 // pred_region
      %55 = dma.done [#allocation5], 256
    $region29: #{tpu_custom_call.1} parent=1 // pred_fallthru
      _
    // Predicated region
    $region30: #{tpu_custom_call.1} parent=1 // pred_check
      _
    $region31: #{tpu_custom_call.1} parent=1 // pred_check_branch
      %57 = sbr.rel (0) target = $region33
    $region32: #{tpu_custom_call.1} parent=1 // pred_region
      %58 = dma.done [#allocation8], 256
    $region33: #{tpu_custom_call.1} parent=1 // pred_fallthru
      _
    %v59 = vld [vmem:[#allocation4] sm:$0xff]
    %v60 = vld [vmem:[#allocation4 + $0x8] sm:$0xff]
    %v61 = vld [vmem:[#allocation7] sm:$0xff]
    %v62 = vld [vmem:[#allocation7 + $0x8] sm:$0xff]
    %v63 = vld [vmem:[%s4] sm:$0x1]
    %v65 = vlaneseq
    %v66 = vshrl.u32 %v65, 7
    %v67 = vsub.s32 0, %v66
    %v68 = vrot.slane %v63, %v67
    %vm70 = vcmask 130048
    %v72 = vsel %vm70, %v59, 0
    %v75 = vsel %vm70, %v60, 0
    %77 = vmatprep.subr.mxu0 0.0
    %78 = vmatpush1.msra.mxu0 %v61
    %79 = vmatprep.subr.mxu0 0.0
    %80 = vmatpush1.msra.mxu0 %v62
    %81 = vmatprep.subr.mxu0 0.0
    %82 = vmatpush1.msra.mxu0 0.0
    %83 = vmatprep.subr.mxu0 0.0
    %84 = vmatpush1.msra.mxu0 0.0
    %85 = vmatprep.subr.mxu0 0.0
    %86 = vmatpush1.msra.mxu0 0.0
    %87 = vmatprep.subr.mxu0 0.0
    %88 = vmatpush1.msra.mxu0 0.0
    %89 = vmatprep.subr.mxu0 0.0
    %90 = vmatpush1.msra.mxu0 0.0
    %91 = vmatprep.subr.mxu0 0.0
    %92 = vmatpush1.msra.mxu0 0.0
    %93 = vmatprep.subr.mxu0 0.0
    %94 = vmatpush1.msra.mxu0 0.0
    %95 = vmatprep.subr.mxu0 0.0
    %96 = vmatpush1.msra.mxu0 0.0
    %97 = vmatprep.subr.mxu0 0.0
    %98 = vmatpush1.msra.mxu0 0.0
    %99 = vmatprep.subr.mxu0 0.0
    %100 = vmatpush1.msra.mxu0 0.0
    %101 = vmatprep.subr.mxu0 0.0
    %102 = vmatpush1.msra.mxu0 0.0
    %103 = vmatprep.subr.mxu0 0.0
    %104 = vmatpush1.msra.mxu0 0.0
    %105 = vmatprep.subr.mxu0 0.0
    %106 = vmatpush1.msra.mxu0 0.0
    %107 = vmatprep.subr.mxu0 0.0
    %108 = vmatpush1.msra.mxu0 0.0
    %109 = vmatprep.subr.mxu0 0.0
    %110 = vmatpush1.msra.mxu0 0.0
    %111 = vmatprep.subr.mxu0 0.0
    %112 = vmatpush1.msra.mxu0 0.0
    %113 = vmatprep.subr.mxu0 0.0
    %114 = vmatpush1.msra.mxu0 0.0
    %115 = vmatprep.subr.mxu0 0.0
    %116 = vmatpush1.msra.mxu0 0.0
    %117 = vmatprep.subr.mxu0 0.0
    %118 = vmatpush1.msra.mxu0 0.0
    %119 = vmatprep.subr.mxu0 0.0
    %120 = vmatpush1.msra.mxu0 0.0
    %121 = vmatprep.subr.mxu0 0.0
    %122 = vmatpush1.msra.mxu0 0.0
    %123 = vmatprep.subr.mxu0 0.0
    %124 = vmatpush1.msra.mxu0 0.0
    %125 = vmatprep.subr.mxu0 0.0
    %126 = vmatpush1.msra.mxu0 0.0
    %127 = vmatprep.subr.mxu0 0.0
    %128 = vmatpush1.msra.mxu0 0.0
    %129 = vmatprep.subr.mxu0 0.0
    %130 = vmatpush1.msra.mxu0 0.0
    %131 = vmatprep.subr.mxu0 0.0
    %132 = vmatpush1.msra.mxu0 0.0
    %133 = vmatprep.subr.mxu0 0.0
    %134 = vmatpush1.msra.mxu0 0.0
    %135 = vmatprep.subr.mxu0 0.0
    %136 = vmatpush1.msra.mxu0 0.0
    %137 = vmatprep.subr.mxu0 0.0
    %138 = vmatpush1.msra.mxu0 0.0
    %139 = vmatprep.subr.mxu0 0.0
    %140 = vmatpush1.msra.mxu0 0.0
    %141 = vmatprep.mubr.f32.mxu0 0.0
    %142 = vmatmul.mubr.f32.gmra.mrb[0].mxu0 %v72
    %v143 = vpop.f32.mrb[0].mxu0
    %v144 = vadd.f32 %v68, %v143
    %v145 = vpop.f32.mrb[0].mxu0
    %146 = vmatprep.mubr.f32.mxu0 0.0
    %147 = vmatmul.mubr.f32.gmra.mrb[0].mxu0 %v75
    %v148 = vpop.f32.mrb[0].mxu0
    %v149 = vadd.f32 %v68, %v148
    %v150 = vpop.f32.mrb[0].mxu0
    %151 = vdwg.mxu0
    %v152 = vld [vmem:[%s3] sm:$0xff]
    %v153 = vld [vmem:[%s3 + $0x8] sm:$0xff]
    %v154 = vld [vmem:[%s3 + $0x10] sm:$0xff]
    %v155 = vld [vmem:[%s3 + $0x18] sm:$0xff]
    %v156 = vlaneseq
    %v157 = vshrl.u32 %v156, 7
    %vm158 = vcmp.eq.s32.totalorder %v157, 0
    %s159 = sld [smem:[#allocation3]]
    %v160 = vstv %s159
    %v161 = vsel %vm158, %v160, 0
    %vm162 = vcmp.eq.s32.totalorder %v157, 1
    %s163 = sld [smem:[#allocation3 + $0x1]]
    %v164 = vstv %s163
    %v165 = vsel %vm162, %v164, %v161
    %vm166 = vcmask 261120
    %v168 = vsel %vm166, 0.0, 0
    %170 = vmatprep.subr.mxu0 0.0
    %171 = vmatpush1.msra.mxu0 %v152
    %172 = vmatprep.subr.mxu0 0.0
    %173 = vmatpush1.msra.mxu0 %v153
    %174 = vmatprep.subr.mxu0 0.0
    %175 = vmatpush1.msra.mxu0 %v154
    %176 = vmatprep.subr.mxu0 0.0
    %177 = vmatpush1.msra.mxu0 %v155
    %178 = vmatprep.subr.mxu0 0.0
    %179 = vmatpush1.msra.mxu0 0.0
    %180 = vmatprep.subr.mxu0 0.0
    %181 = vmatpush1.msra.mxu0 0.0
    %182 = vmatprep.subr.mxu0 0.0
    %183 = vmatpush1.msra.mxu0 0.0
    %184 = vmatprep.subr.mxu0 0.0
    %185 = vmatpush1.msra.mxu0 0.0
    %186 = vmatprep.subr.mxu0 0.0
    %187 = vmatpush1.msra.mxu0 0.0
    %188 = vmatprep.subr.mxu0 0.0
    %189 = vmatpush1.msra.mxu0 0.0
    %190 = vmatprep.subr.mxu0 0.0
    %191 = vmatpush1.msra.mxu0 0.0
    %192 = vmatprep.subr.mxu0 0.0
    %193 = vmatpush1.msra.mxu0 0.0
    %194 = vmatprep.subr.mxu0 0.0
    %195 = vmatpush1.msra.mxu0 0.0
    %196 = vmatprep.subr.mxu0 0.0
    %197 = vmatpush1.msra.mxu0 0.0
    %198 = vmatprep.subr.mxu0 0.0
    %199 = vmatpush1.msra.mxu0 0.0
    %200 = vmatprep.subr.mxu0 0.0
    %201 = vmatpush1.msra.mxu0 0.0
    %202 = vmatprep.subr.mxu0 0.0
    %203 = vmatpush1.msra.mxu0 0.0
    %204 = vmatprep.subr.mxu0 0.0
    %205 = vmatpush1.msra.mxu0 0.0
    %206 = vmatprep.subr.mxu0 0.0
    %207 = vmatpush1.msra.mxu0 0.0
    %208 = vmatprep.subr.mxu0 0.0
    %209 = vmatpush1.msra.mxu0 0.0
    %210 = vmatprep.subr.mxu0 0.0
    %211 = vmatpush1.msra.mxu0 0.0
    %212 = vmatprep.subr.mxu0 0.0
    %213 = vmatpush1.msra.mxu0 0.0
    %214 = vmatprep.subr.mxu0 0.0
    %215 = vmatpush1.msra.mxu0 0.0
    %216 = vmatprep.subr.mxu0 0.0
    %217 = vmatpush1.msra.mxu0 0.0
    %218 = vmatprep.subr.mxu0 0.0
    %219 = vmatpush1.msra.mxu0 0.0
    %220 = vmatprep.subr.mxu0 0.0
    %221 = vmatpush1.msra.mxu0 0.0
    %222 = vmatprep.subr.mxu0 0.0
    %223 = vmatpush1.msra.mxu0 0.0
    %224 = vmatprep.subr.mxu0 0.0
    %225 = vmatpush1.msra.mxu0 0.0
    %226 = vmatprep.subr.mxu0 0.0
    %227 = vmatpush1.msra.mxu0 0.0
    %228 = vmatprep.subr.mxu0 0.0
    %229 = vmatpush1.msra.mxu0 0.0
    %230 = vmatprep.subr.mxu0 0.0
    %231 = vmatpush1.msra.mxu0 0.0
    %232 = vmatprep.subr.mxu0 0.0
    %233 = vmatpush1.msra.mxu0 0.0
    %234 = vmatprep.mubr.f32.mxu0 0.0
    %235 = vmatmul.mubr.f32.gmra.mrb[0].mxu0 %v168
    %v236 = vpop.f32.mrb[0].mxu0
    %v237 = vadd.f32 0.0, %v236
    %v238 = vpop.f32.mrb[0].mxu0
    %239 = vdwg.mxu0
    %v240 = vadd.f32 %v144, %v237
    %v241 = vxor.u32 %v240, 2147483648
    %v242 = vmul.f32 %v241, 1.442695
    %v243 = vpow.pop %v242
    %v244 = vadd.f32 %v243, 1.0
    %v245 = vrcp.pop %v244
    %v246 = vmul.f32 1.0, %v245
    %v247 = vtanh.pop %v240
    %v248 = vmul.f32 %v246, 0.0
    %250 = vrot.lane.b32.xlu0 %v247, 64
    %v251 = vpop.permute.xlu0 %250
    %v253 = vmul.f32 %v246, %v251
    %255 = vrot.lane.b32.xlu0 %v253, 32
    %v256 = vpop.permute.xlu0 %255
    %v258 = vadd.f32 %v248, %v256
    %v259 = vtanh.pop %v258
    %261 = vrot.lane.b32.xlu0 %v259, 64
    %v262 = vpop.permute.xlu0 %261
    %v264 = vmul.f32 %v246, %v262
    %vm265 = vcmp.eq.s32.totalorder %v165, 0
    %v266 = vsel %vm265, 1, 0
    %vm267 = vcmp.eq.s32.totalorder %v266, 1
    %v268 = vsel %vm267, %v264, 0.0
    %270 = vrot.lane.b32.xlu0 %v264, 32
    %v271 = vpop.permute.xlu0 %270
    %v272 = vsel %vm166, %v271, 0
    %274 = vmatprep.subr.mxu0 0.0
    %275 = vmatpush1.msra.mxu0 %v152
    %276 = vmatprep.subr.mxu0 0.0
    %277 = vmatpush1.msra.mxu0 %v153
    %278 = vmatprep.subr.mxu0 0.0
    %279 = vmatpush1.msra.mxu0 %v154
    %280 = vmatprep.subr.mxu0 0.0
    %281 = vmatpush1.msra.mxu0 %v155
    %282 = vmatprep.subr.mxu0 0.0
    %283 = vmatpush1.msra.mxu0 0.0
    %284 = vmatprep.subr.mxu0 0.0
    %285 = vmatpush1.msra.mxu0 0.0
    %286 = vmatprep.subr.mxu0 0.0
    %287 = vmatpush1.msra.mxu0 0.0
    %288 = vmatprep.subr.mxu0 0.0
    %289 = vmatpush1.msra.mxu0 0.0
    %290 = vmatprep.subr.mxu0 0.0
    %291 = vmatpush1.msra.mxu0 0.0
    %292 = vmatprep.subr.mxu0 0.0
    %293 = vmatpush1.msra.mxu0 0.0
    %294 = vmatprep.subr.mxu0 0.0
    %295 = vmatpush1.msra.mxu0 0.0
    %296 = vmatprep.subr.mxu0 0.0
    %297 = vmatpush1.msra.mxu0 0.0
    %298 = vmatprep.subr.mxu0 0.0
    %299 = vmatpush1.msra.mxu0 0.0
    %300 = vmatprep.subr.mxu0 0.0
    %301 = vmatpush1.msra.mxu0 0.0
    %302 = vmatprep.subr.mxu0 0.0
    %303 = vmatpush1.msra.mxu0 0.0
    %304 = vmatprep.subr.mxu0 0.0
    %305 = vmatpush1.msra.mxu0 0.0
    %306 = vmatprep.subr.mxu0 0.0
    %307 = vmatpush1.msra.mxu0 0.0
    %308 = vmatprep.subr.mxu0 0.0
    %309 = vmatpush1.msra.mxu0 0.0
    %310 = vmatprep.subr.mxu0 0.0
    %311 = vmatpush1.msra.mxu0 0.0
    %312 = vmatprep.subr.mxu0 0.0
    %313 = vmatpush1.msra.mxu0 0.0
    %314 = vmatprep.subr.mxu0 0.0
    %315 = vmatpush1.msra.mxu0 0.0
    %316 = vmatprep.subr.mxu0 0.0
    %317 = vmatpush1.msra.mxu0 0.0
    %318 = vmatprep.subr.mxu0 0.0
    %319 = vmatpush1.msra.mxu0 0.0
    %320 = vmatprep.subr.mxu0 0.0
    %321 = vmatpush1.msra.mxu0 0.0
    %322 = vmatprep.subr.mxu0 0.0
    %323 = vmatpush1.msra.mxu0 0.0
    %324 = vmatprep.subr.mxu0 0.0
    %325 = vmatpush1.msra.mxu0 0.0
    %326 = vmatprep.subr.mxu0 0.0
    %327 = vmatpush1.msra.mxu0 0.0
    %328 = vmatprep.subr.mxu0 0.0
    %329 = vmatpush1.msra.mxu0 0.0
    %330 = vmatprep.subr.mxu0 0.0
    %331 = vmatpush1.msra.mxu0 0.0
    %332 = vmatprep.subr.mxu0 0.0
    %333 = vmatpush1.msra.mxu0 0.0
    %334 = vmatprep.subr.mxu0 0.0
    %335 = vmatpush1.msra.mxu0 0.0
    %336 = vmatprep.subr.mxu0 0.0
    %337 = vmatpush1.msra.mxu0 0.0
    %338 = vmatprep.mubr.f32.mxu0 0.0
    %339 = vmatmul.mubr.f32.gmra.mrb[0].mxu0 %v272
    %v340 = vpop.f32.mrb[0].mxu0
    %v341 = vadd.f32 0.0, %v340
    %v342 = vpop.f32.mrb[0].mxu0
    %343 = vdwg.mxu0
    %v345 = vrot.slane %v341, 6
    %v347 = vadd.f32 %v144, %v345
    %v348 = vxor.u32 %v347, 2147483648
    %v349 = vmul.f32 %v348, 1.442695
    %v350 = vpow.pop %v349
    %v351 = vadd.f32 %v350, 1.0
    %v352 = vrcp.pop %v351
    %v353 = vmul.f32 1.0, %v352
    %v354 = vtanh.pop %v347
    %v356 = vrot.slane %v258, 6
    %v358 = vmul.f32 %v353, %v356
    %360 = vrot.lane.b32.xlu0 %v354, 64
    %v361 = vpop.permute.xlu0 %360
    %v363 = vmul.f32 %v353, %v361
    %365 = vrot.lane.b32.xlu0 %v363, 32
    %v366 = vpop.permute.xlu0 %365
    %v368 = vadd.f32 %v358, %v366
    %v369 = vtanh.pop %v368
    %371 = vrot.lane.b32.xlu0 %v369, 64
    %v372 = vpop.permute.xlu0 %371
    %v374 = vmul.f32 %v353, %v372
    %vm375 = vcmp.eq.s32.totalorder %v165, 1
    %v376 = vsel %vm375, 1, 0
    %vm377 = vcmp.eq.s32.totalorder %v376, 1
    %v379 = vrot.slane %v374, 2
    %380 = vrot.lane.b32.xlu0 %v379, 32
    %v381 = vpop.permute.xlu0 %380
    %384 = vrot.lane.b32.xlu0 %v268, 32
    %v385 = vpop.permute.xlu0 %384
    %v387 = vsel %vm377, %v381, %v385
    %v388 = vsel %vm166, %v381, 0
    %390 = vmatprep.subr.mxu0 0.0
    %391 = vmatpush1.msra.mxu0 %v152
    %392 = vmatprep.subr.mxu0 0.0
    %393 = vmatpush1.msra.mxu0 %v153
    %394 = vmatprep.subr.mxu0 0.0
    %395 = vmatpush1.msra.mxu0 %v154
    %396 = vmatprep.subr.mxu0 0.0
    %397 = vmatpush1.msra.mxu0 %v155
    %398 = vmatprep.subr.mxu0 0.0
    %399 = vmatpush1.msra.mxu0 0.0
    %400 = vmatprep.subr.mxu0 0.0
    %401 = vmatpush1.msra.mxu0 0.0
    %402 = vmatprep.subr.mxu0 0.0
    %403 = vmatpush1.msra.mxu0 0.0
    %404 = vmatprep.subr.mxu0 0.0
    %405 = vmatpush1.msra.mxu0 0.0
    %406 = vmatprep.subr.mxu0 0.0
    %407 = vmatpush1.msra.mxu0 0.0
    %408 = vmatprep.subr.mxu0 0.0
    %409 = vmatpush1.msra.mxu0 0.0
    %410 = vmatprep.subr.mxu0 0.0
    %411 = vmatpush1.msra.mxu0 0.0
    %412 = vmatprep.subr.mxu0 0.0
    %413 = vmatpush1.msra.mxu0 0.0
    %414 = vmatprep.subr.mxu0 0.0
    %415 = vmatpush1.msra.mxu0 0.0
    %416 = vmatprep.subr.mxu0 0.0
    %417 = vmatpush1.msra.mxu0 0.0
    %418 = vmatprep.subr.mxu0 0.0
    %419 = vmatpush1.msra.mxu0 0.0
    %420 = vmatprep.subr.mxu0 0.0
    %421 = vmatpush1.msra.mxu0 0.0
    %422 = vmatprep.subr.mxu0 0.0
    %423 = vmatpush1.msra.mxu0 0.0
    %424 = vmatprep.subr.mxu0 0.0
    %425 = vmatpush1.msra.mxu0 0.0
    %426 = vmatprep.subr.mxu0 0.0
    %427 = vmatpush1.msra.mxu0 0.0
    %428 = vmatprep.subr.mxu0 0.0
    %429 = vmatpush1.msra.mxu0 0.0
    %430 = vmatprep.subr.mxu0 0.0
    %431 = vmatpush1.msra.mxu0 0.0
    %432 = vmatprep.subr.mxu0 0.0
    %433 = vmatpush1.msra.mxu0 0.0
    %434 = vmatprep.subr.mxu0 0.0
    %435 = vmatpush1.msra.mxu0 0.0
    %436 = vmatprep.subr.mxu0 0.0
    %437 = vmatpush1.msra.mxu0 0.0
    %438 = vmatprep.subr.mxu0 0.0
    %439 = vmatpush1.msra.mxu0 0.0
    %440 = vmatprep.subr.mxu0 0.0
    %441 = vmatpush1.msra.mxu0 0.0
    %442 = vmatprep.subr.mxu0 0.0
    %443 = vmatpush1.msra.mxu0 0.0
    %444 = vmatprep.subr.mxu0 0.0
    %445 = vmatpush1.msra.mxu0 0.0
    %446 = vmatprep.subr.mxu0 0.0
    %447 = vmatpush1.msra.mxu0 0.0
    %448 = vmatprep.subr.mxu0 0.0
    %449 = vmatpush1.msra.mxu0 0.0
    %450 = vmatprep.subr.mxu0 0.0
    %451 = vmatpush1.msra.mxu0 0.0
    %452 = vmatprep.subr.mxu0 0.0
    %453 = vmatpush1.msra.mxu0 0.0
    %454 = vmatprep.mubr.f32.mxu0 0.0
    %455 = vmatmul.mubr.f32.gmra.mrb[0].mxu0 %v388
    %v456 = vpop.f32.mrb[0].mxu0
    %v457 = vadd.f32 0.0, %v456
    %v458 = vpop.f32.mrb[0].mxu0
    %459 = vdwg.mxu0
    %v461 = vrot.slane %v457, 4
    %v463 = vadd.f32 %v144, %v461
    %v464 = vxor.u32 %v463, 2147483648
    %v465 = vmul.f32 %v464, 1.442695
    %v466 = vpow.pop %v465
    %v467 = vadd.f32 %v466, 1.0
    %v468 = vrcp.pop %v467
    %v469 = vmul.f32 1.0, %v468
    %v470 = vtanh.pop %v463
    %v472 = vrot.slane %v368, 6
    %v474 = vmul.f32 %v469, %v472
    %476 = vrot.lane.b32.xlu0 %v470, 64
    %v477 = vpop.permute.xlu0 %476
    %v479 = vmul.f32 %v469, %v477
    %481 = vrot.lane.b32.xlu0 %v479, 32
    %v482 = vpop.permute.xlu0 %481
    %v484 = vadd.f32 %v474, %v482
    %v485 = vtanh.pop %v484
    %487 = vrot.lane.b32.xlu0 %v485, 64
    %v488 = vpop.permute.xlu0 %487
    %v490 = vmul.f32 %v469, %v488
    %vm491 = vcmp.eq.s32.totalorder %v165, 2
    %v492 = vsel %vm491, 1, 0
    %vm493 = vcmp.eq.s32.totalorder %v492, 1
    %v495 = vrot.slane %v490, 4
    %496 = vrot.lane.b32.xlu0 %v495, 32
    %v497 = vpop.permute.xlu0 %496
    %v499 = vsel %vm493, %v497, %v387
    %v500 = vsel %vm166, %v497, 0
    %502 = vmatprep.subr.mxu0 0.0
    %503 = vmatpush1.msra.mxu0 %v152
    %504 = vmatprep.subr.mxu0 0.0
    %505 = vmatpush1.msra.mxu0 %v153
    %506 = vmatprep.subr.mxu0 0.0
    %507 = vmatpush1.msra.mxu0 %v154
    %508 = vmatprep.subr.mxu0 0.0
    %509 = vmatpush1.msra.mxu0 %v155
    %510 = vmatprep.subr.mxu0 0.0
    %511 = vmatpush1.msra.mxu0 0.0
    %512 = vmatprep.subr.mxu0 0.0
    %513 = vmatpush1.msra.mxu0 0.0
    %514 = vmatprep.subr.mxu0 0.0
    %515 = vmatpush1.msra.mxu0 0.0
    %516 = vmatprep.subr.mxu0 0.0
    %517 = vmatpush1.msra.mxu0 0.0
    %518 = vmatprep.subr.mxu0 0.0
    %519 = vmatpush1.msra.mxu0 0.0
    %520 = vmatprep.subr.mxu0 0.0
    %521 = vmatpush1.msra.mxu0 0.0
    %522 = vmatprep.subr.mxu0 0.0
    %523 = vmatpush1.msra.mxu0 0.0
    %524 = vmatprep.subr.mxu0 0.0
    %525 = vmatpush1.msra.mxu0 0.0
    %526 = vmatprep.subr.mxu0 0.0
    %527 = vmatpush1.msra.mxu0 0.0
    %528 = vmatprep.subr.mxu0 0.0
    %529 = vmatpush1.msra.mxu0 0.0
    %530 = vmatprep.subr.mxu0 0.0
    %531 = vmatpush1.msra.mxu0 0.0
    %532 = vmatprep.subr.mxu0 0.0
    %533 = vmatpush1.msra.mxu0 0.0
    %534 = vmatprep.subr.mxu0 0.0
    %535 = vmatpush1.msra.mxu0 0.0
    %536 = vmatprep.subr.mxu0 0.0
    %537 = vmatpush1.msra.mxu0 0.0
    %538 = vmatprep.subr.mxu0 0.0
    %539 = vmatpush1.msra.mxu0 0.0
    %540 = vmatprep.subr.mxu0 0.0
    %541 = vmatpush1.msra.mxu0 0.0
    %542 = vmatprep.subr.mxu0 0.0
    %543 = vmatpush1.msra.mxu0 0.0
    %544 = vmatprep.subr.mxu0 0.0
    %545 = vmatpush1.msra.mxu0 0.0
    %546 = vmatprep.subr.mxu0 0.0
    %547 = vmatpush1.msra.mxu0 0.0
    %548 = vmatprep.subr.mxu0 0.0
    %549 = vmatpush1.msra.mxu0 0.0
    %550 = vmatprep.subr.mxu0 0.0
    %551 = vmatpush1.msra.mxu0 0.0
    %552 = vmatprep.subr.mxu0 0.0
    %553 = vmatpush1.msra.mxu0 0.0
    %554 = vmatprep.subr.mxu0 0.0
    %555 = vmatpush1.msra.mxu0 0.0
    %556 = vmatprep.subr.mxu0 0.0
    %557 = vmatpush1.msra.mxu0 0.0
    %558 = vmatprep.subr.mxu0 0.0
    %559 = vmatpush1.msra.mxu0 0.0
    %560 = vmatprep.subr.mxu0 0.0
    %561 = vmatpush1.msra.mxu0 0.0
    %562 = vmatprep.subr.mxu0 0.0
    %563 = vmatpush1.msra.mxu0 0.0
    %564 = vmatprep.subr.mxu0 0.0
    %565 = vmatpush1.msra.mxu0 0.0
    %566 = vmatprep.mubr.f32.mxu0 0.0
    %567 = vmatmul.mubr.f32.gmra.mrb[0].mxu0 %v500
    %v568 = vpop.f32.mrb[0].mxu0
    %v569 = vadd.f32 0.0, %v568
    %v570 = vpop.f32.mrb[0].mxu0
    %571 = vdwg.mxu0
    %v573 = vrot.slane %v569, 2
    %v575 = vadd.f32 %v144, %v573
    %v576 = vxor.u32 %v575, 2147483648
    %v577 = vmul.f32 %v576, 1.442695
    %v578 = vpow.pop %v577
    %v579 = vadd.f32 %v578, 1.0
    %v580 = vrcp.pop %v579
    %v581 = vmul.f32 1.0, %v580
    %v582 = vtanh.pop %v575
    %v584 = vrot.slane %v484, 6
    %v586 = vmul.f32 %v581, %v584
    %588 = vrot.lane.b32.xlu0 %v582, 64
    %v589 = vpop.permute.xlu0 %588
    %v591 = vmul.f32 %v581, %v589
    %593 = vrot.lane.b32.xlu0 %v591, 32
    %v594 = vpop.permute.xlu0 %593
    %v596 = vadd.f32 %v586, %v594
    %v597 = vtanh.pop %v596
    %599 = vrot.lane.b32.xlu0 %v597, 64
    %v600 = vpop.permute.xlu0 %599
    %v602 = vmul.f32 %v581, %v600
    %vm603 = vcmp.eq.s32.totalorder %v165, 3
    %v604 = vsel %vm603, 1, 0
    %vm605 = vcmp.eq.s32.totalorder %v604, 1
    %v607 = vrot.slane %v602, 6
    %608 = vrot.lane.b32.xlu0 %v607, 32
    %v609 = vpop.permute.xlu0 %608
    %v611 = vsel %vm605, %v609, %v499
    %v612 = vsel %vm166, %v609, 0
    %614 = vmatprep.subr.mxu0 0.0
    %615 = vmatpush1.msra.mxu0 %v152
    %616 = vmatprep.subr.mxu0 0.0
    %617 = vmatpush1.msra.mxu0 %v153
    %618 = vmatprep.subr.mxu0 0.0
    %619 = vmatpush1.msra.mxu0 %v154
    %620 = vmatprep.subr.mxu0 0.0
    %621 = vmatpush1.msra.mxu0 %v155
    %622 = vmatprep.subr.mxu0 0.0
    %623 = vmatpush1.msra.mxu0 0.0
    %624 = vmatprep.subr.mxu0 0.0
    %625 = vmatpush1.msra.mxu0 0.0
    %626 = vmatprep.subr.mxu0 0.0
    %627 = vmatpush1.msra.mxu0 0.0
    %628 = vmatprep.subr.mxu0 0.0
    %629 = vmatpush1.msra.mxu0 0.0
    %630 = vmatprep.subr.mxu0 0.0
    %631 = vmatpush1.msra.mxu0 0.0
    %632 = vmatprep.subr.mxu0 0.0
    %633 = vmatpush1.msra.mxu0 0.0
    %634 = vmatprep.subr.mxu0 0.0
    %635 = vmatpush1.msra.mxu0 0.0
    %636 = vmatprep.subr.mxu0 0.0
    %637 = vmatpush1.msra.mxu0 0.0
    %638 = vmatprep.subr.mxu0 0.0
    %639 = vmatpush1.msra.mxu0 0.0
    %640 = vmatprep.subr.mxu0 0.0
    %641 = vmatpush1.msra.mxu0 0.0
    %642 = vmatprep.subr.mxu0 0.0
    %643 = vmatpush1.msra.mxu0 0.0
    %644 = vmatprep.subr.mxu0 0.0
    %645 = vmatpush1.msra.mxu0 0.0
    %646 = vmatprep.subr.mxu0 0.0
    %647 = vmatpush1.msra.mxu0 0.0
    %648 = vmatprep.subr.mxu0 0.0
    %649 = vmatpush1.msra.mxu0 0.0
    %650 = vmatprep.subr.mxu0 0.0
    %651 = vmatpush1.msra.mxu0 0.0
    %652 = vmatprep.subr.mxu0 0.0
    %653 = vmatpush1.msra.mxu0 0.0
    %654 = vmatprep.subr.mxu0 0.0
    %655 = vmatpush1.msra.mxu0 0.0
    %656 = vmatprep.subr.mxu0 0.0
    %657 = vmatpush1.msra.mxu0 0.0
    %658 = vmatprep.subr.mxu0 0.0
    %659 = vmatpush1.msra.mxu0 0.0
    %660 = vmatprep.subr.mxu0 0.0
    %661 = vmatpush1.msra.mxu0 0.0
    %662 = vmatprep.subr.mxu0 0.0
    %663 = vmatpush1.msra.mxu0 0.0
    %664 = vmatprep.subr.mxu0 0.0
    %665 = vmatpush1.msra.mxu0 0.0
    %666 = vmatprep.subr.mxu0 0.0
    %667 = vmatpush1.msra.mxu0 0.0
    %668 = vmatprep.subr.mxu0 0.0
    %669 = vmatpush1.msra.mxu0 0.0
    %670 = vmatprep.subr.mxu0 0.0
    %671 = vmatpush1.msra.mxu0 0.0
    %672 = vmatprep.subr.mxu0 0.0
    %673 = vmatpush1.msra.mxu0 0.0
    %674 = vmatprep.subr.mxu0 0.0
    %675 = vmatpush1.msra.mxu0 0.0
    %676 = vmatprep.subr.mxu0 0.0
    %677 = vmatpush1.msra.mxu0 0.0
    %678 = vmatprep.mubr.f32.mxu0 0.0
    %679 = vmatmul.mubr.f32.gmra.mrb[0].mxu0 %v612
    %v680 = vpop.f32.mrb[0].mxu0
    %v681 = vadd.f32 0.0, %v680
    %v682 = vpop.f32.mrb[0].mxu0
    %683 = vdwg.mxu0
    %v684 = vadd.f32 %v149, %v681
    %v685 = vxor.u32 %v684, 2147483648
    %v686 = vmul.f32 %v685, 1.442695
    %v687 = vpow.pop %v686
    %v688 = vadd.f32 %v687, 1.0
    %v689 = vrcp.pop %v688
    %v690 = vmul.f32 1.0, %v689
    %v691 = vtanh.pop %v684
    %v693 = vrot.slane %v596, 6
    %v695 = vmul.f32 %v690, %v693
    %697 = vrot.lane.b32.xlu0 %v691, 64
    %v698 = vpop.permute.xlu0 %697
    %v700 = vmul.f32 %v690, %v698
    %702 = vrot.lane.b32.xlu0 %v700, 32
    %v703 = vpop.permute.xlu0 %702
    %v705 = vadd.f32 %v695, %v703
    %v706 = vtanh.pop %v705
    %708 = vrot.lane.b32.xlu0 %v706, 64
    %v709 = vpop.permute.xlu0 %708
    %v711 = vmul.f32 %v690, %v709
    %vm712 = vcmp.eq.s32.totalorder %v165, 4
    %v713 = vsel %vm712, 1, 0
    %vm714 = vcmp.eq.s32.totalorder %v713, 1
    %716 = vrot.lane.b32.xlu0 %v611, 96
    %v717 = vpop.permute.xlu0 %716
    %v719 = vsel %vm714, %v711, %v717
    %721 = vrot.lane.b32.xlu0 %v711, 32
    %v722 = vpop.permute.xlu0 %721
    %v723 = vsel %vm166, %v722, 0
    %725 = vmatprep.subr.mxu0 0.0
    %726 = vmatpush1.msra.mxu0 %v152
    %727 = vmatprep.subr.mxu0 0.0
    %728 = vmatpush1.msra.mxu0 %v153
    %729 = vmatprep.subr.mxu0 0.0
    %730 = vmatpush1.msra.mxu0 %v154
    %731 = vmatprep.subr.mxu0 0.0
    %732 = vmatpush1.msra.mxu0 %v155
    %733 = vmatprep.subr.mxu0 0.0
    %734 = vmatpush1.msra.mxu0 0.0
    %735 = vmatprep.subr.mxu0 0.0
    %736 = vmatpush1.msra.mxu0 0.0
    %737 = vmatprep.subr.mxu0 0.0
    %738 = vmatpush1.msra.mxu0 0.0
    %739 = vmatprep.subr.mxu0 0.0
    %740 = vmatpush1.msra.mxu0 0.0
    %741 = vmatprep.subr.mxu0 0.0
    %742 = vmatpush1.msra.mxu0 0.0
    %743 = vmatprep.subr.mxu0 0.0
    %744 = vmatpush1.msra.mxu0 0.0
    %745 = vmatprep.subr.mxu0 0.0
    %746 = vmatpush1.msra.mxu0 0.0
    %747 = vmatprep.subr.mxu0 0.0
    %748 = vmatpush1.msra.mxu0 0.0
    %749 = vmatprep.subr.mxu0 0.0
    %750 = vmatpush1.msra.mxu0 0.0
    %751 = vmatprep.subr.mxu0 0.0
    %752 = vmatpush1.msra.mxu0 0.0
    %753 = vmatprep.subr.mxu0 0.0
    %754 = vmatpush1.msra.mxu0 0.0
    %755 = vmatprep.subr.mxu0 0.0
    %756 = vmatpush1.msra.mxu0 0.0
    %757 = vmatprep.subr.mxu0 0.0
    %758 = vmatpush1.msra.mxu0 0.0
    %759 = vmatprep.subr.mxu0 0.0
    %760 = vmatpush1.msra.mxu0 0.0
    %761 = vmatprep.subr.mxu0 0.0
    %762 = vmatpush1.msra.mxu0 0.0
    %763 = vmatprep.subr.mxu0 0.0
    %764 = vmatpush1.msra.mxu0 0.0
    %765 = vmatprep.subr.mxu0 0.0
    %766 = vmatpush1.msra.mxu0 0.0
    %767 = vmatprep.subr.mxu0 0.0
    %768 = vmatpush1.msra.mxu0 0.0
    %769 = vmatprep.subr.mxu0 0.0
    %770 = vmatpush1.msra.mxu0 0.0
    %771 = vmatprep.subr.mxu0 0.0
    %772 = vmatpush1.msra.mxu0 0.0
    %773 = vmatprep.subr.mxu0 0.0
    %774 = vmatpush1.msra.mxu0 0.0
    %775 = vmatprep.subr.mxu0 0.0
    %776 = vmatpush1.msra.mxu0 0.0
    %777 = vmatprep.subr.mxu0 0.0
    %778 = vmatpush1.msra.mxu0 0.0
    %779 = vmatprep.subr.mxu0 0.0
    %780 = vmatpush1.msra.mxu0 0.0
    %781 = vmatprep.subr.mxu0 0.0
    %782 = vmatpush1.msra.mxu0 0.0
    %783 = vmatprep.subr.mxu0 0.0
    %784 = vmatpush1.msra.mxu0 0.0
    %785 = vmatprep.subr.mxu0 0.0
    %786 = vmatpush1.msra.mxu0 0.0
    %787 = vmatprep.subr.mxu0 0.0
    %788 = vmatpush1.msra.mxu0 0.0
    %789 = vmatprep.mubr.f32.mxu0 0.0
    %790 = vmatmul.mubr.f32.gmra.mrb[0].mxu0 %v723
    %v791 = vpop.f32.mrb[0].mxu0
    %v792 = vadd.f32 0.0, %v791
    %v793 = vpop.f32.mrb[0].mxu0
    %794 = vdwg.mxu0
    %v796 = vrot.slane %v792, 6
    %v798 = vadd.f32 %v149, %v796
    %v799 = vxor.u32 %v798, 2147483648
    %v800 = vmul.f32 %v799, 1.442695
    %v801 = vpow.pop %v800
    %v802 = vadd.f32 %v801, 1.0
    %v803 = vrcp.pop %v802
    %v804 = vmul.f32 1.0, %v803
    %v805 = vtanh.pop %v798
    %v807 = vrot.slane %v705, 6
    %v809 = vmul.f32 %v804, %v807
    %811 = vrot.lane.b32.xlu0 %v805, 64
    %v812 = vpop.permute.xlu0 %811
    %v814 = vmul.f32 %v804, %v812
    %816 = vrot.lane.b32.xlu0 %v814, 32
    %v817 = vpop.permute.xlu0 %816
    %v819 = vadd.f32 %v809, %v817
    %v820 = vtanh.pop %v819
    %822 = vrot.lane.b32.xlu0 %v820, 64
    %v823 = vpop.permute.xlu0 %822
    %v825 = vmul.f32 %v804, %v823
    %vm826 = vcmp.eq.s32.totalorder %v165, 5
    %v827 = vsel %vm826, 1, 0
    %vm828 = vcmp.eq.s32.totalorder %v827, 1
    %v830 = vrot.slane %v825, 2
    %831 = vrot.lane.b32.xlu0 %v830, 32
    %v832 = vpop.permute.xlu0 %831
    %835 = vrot.lane.b32.xlu0 %v719, 32
    %v836 = vpop.permute.xlu0 %835
    %v838 = vsel %vm828, %v832, %v836
    %v839 = vsel %vm166, %v832, 0
    %841 = vmatprep.subr.mxu0 0.0
    %842 = vmatpush1.msra.mxu0 %v152
    %843 = vmatprep.subr.mxu0 0.0
    %844 = vmatpush1.msra.mxu0 %v153
    %845 = vmatprep.subr.mxu0 0.0
    %846 = vmatpush1.msra.mxu0 %v154
    %847 = vmatprep.subr.mxu0 0.0
    %848 = vmatpush1.msra.mxu0 %v155
    %849 = vmatprep.subr.mxu0 0.0
    %850 = vmatpush1.msra.mxu0 0.0
    %851 = vmatprep.subr.mxu0 0.0
    %852 = vmatpush1.msra.mxu0 0.0
    %853 = vmatprep.subr.mxu0 0.0
    %854 = vmatpush1.msra.mxu0 0.0
    %855 = vmatprep.subr.mxu0 0.0
    %856 = vmatpush1.msra.mxu0 0.0
    %857 = vmatprep.subr.mxu0 0.0
    %858 = vmatpush1.msra.mxu0 0.0
    %859 = vmatprep.subr.mxu0 0.0
    %860 = vmatpush1.msra.mxu0 0.0
    %861 = vmatprep.subr.mxu0 0.0
    %862 = vmatpush1.msra.mxu0 0.0
    %863 = vmatprep.subr.mxu0 0.0
    %864 = vmatpush1.msra.mxu0 0.0
    %865 = vmatprep.subr.mxu0 0.0
    %866 = vmatpush1.msra.mxu0 0.0
    %867 = vmatprep.subr.mxu0 0.0
    %868 = vmatpush1.msra.mxu0 0.0
    %869 = vmatprep.subr.mxu0 0.0
    %870 = vmatpush1.msra.mxu0 0.0
    %871 = vmatprep.subr.mxu0 0.0
    %872 = vmatpush1.msra.mxu0 0.0
    %873 = vmatprep.subr.mxu0 0.0
    %874 = vmatpush1.msra.mxu0 0.0
    %875 = vmatprep.subr.mxu0 0.0
    %876 = vmatpush1.msra.mxu0 0.0
    %877 = vmatprep.subr.mxu0 0.0
    %878 = vmatpush1.msra.mxu0 0.0
    %879 = vmatprep.subr.mxu0 0.0
    %880 = vmatpush1.msra.mxu0 0.0
    %881 = vmatprep.subr.mxu0 0.0
    %882 = vmatpush1.msra.mxu0 0.0
    %883 = vmatprep.subr.mxu0 0.0
    %884 = vmatpush1.msra.mxu0 0.0
    %885 = vmatprep.subr.mxu0 0.0
    %886 = vmatpush1.msra.mxu0 0.0
    %887 = vmatprep.subr.mxu0 0.0
    %888 = vmatpush1.msra.mxu0 0.0
    %889 = vmatprep.subr.mxu0 0.0
    %890 = vmatpush1.msra.mxu0 0.0
    %891 = vmatprep.subr.mxu0 0.0
    %892 = vmatpush1.msra.mxu0 0.0
    %893 = vmatprep.subr.mxu0 0.0
    %894 = vmatpush1.msra.mxu0 0.0
    %895 = vmatprep.subr.mxu0 0.0
    %896 = vmatpush1.msra.mxu0 0.0
    %897 = vmatprep.subr.mxu0 0.0
    %898 = vmatpush1.msra.mxu0 0.0
    %899 = vmatprep.subr.mxu0 0.0
    %900 = vmatpush1.msra.mxu0 0.0
    %901 = vmatprep.subr.mxu0 0.0
    %902 = vmatpush1.msra.mxu0 0.0
    %903 = vmatprep.subr.mxu0 0.0
    %904 = vmatpush1.msra.mxu0 0.0
    %905 = vmatprep.mubr.f32.mxu0 0.0
    %906 = vmatmul.mubr.f32.gmra.mrb[0].mxu0 %v839
    %v907 = vpop.f32.mrb[0].mxu0
    %v908 = vadd.f32 0.0, %v907
    %v909 = vpop.f32.mrb[0].mxu0
    %910 = vdwg.mxu0
    %v912 = vrot.slane %v908, 4
    %v914 = vadd.f32 %v149, %v912
    %v915 = vxor.u32 %v914, 2147483648
    %v916 = vmul.f32 %v915, 1.442695
    %v917 = vpow.pop %v916
    %v918 = vadd.f32 %v917, 1.0
    %v919 = vrcp.pop %v918
    %v920 = vmul.f32 1.0, %v919
    %v921 = vtanh.pop %v914
    %v923 = vrot.slane %v819, 6
    %v925 = vmul.f32 %v920, %v923
    %927 = vrot.lane.b32.xlu0 %v921, 64
    %v928 = vpop.permute.xlu0 %927
    %v930 = vmul.f32 %v920, %v928
    %932 = vrot.lane.b32.xlu0 %v930, 32
    %v933 = vpop.permute.xlu0 %932
    %v935 = vadd.f32 %v925, %v933
    %v936 = vtanh.pop %v935
    %938 = vrot.lane.b32.xlu0 %v936, 64
    %v939 = vpop.permute.xlu0 %938
    %v941 = vmul.f32 %v920, %v939
    %vm942 = vcmp.eq.s32.totalorder %v165, 6
    %v943 = vsel %vm942, 1, 0
    %vm944 = vcmp.eq.s32.totalorder %v943, 1
    %v946 = vrot.slane %v941, 4
    %947 = vrot.lane.b32.xlu0 %v946, 32
    %v948 = vpop.permute.xlu0 %947
    %v950 = vsel %vm944, %v948, %v838
    %v951 = vsel %vm166, %v948, 0
    %953 = vmatprep.subr.mxu0 0.0
    %954 = vmatpush1.msra.mxu0 %v152
    %955 = vmatprep.subr.mxu0 0.0
    %956 = vmatpush1.msra.mxu0 %v153
    %957 = vmatprep.subr.mxu0 0.0
    %958 = vmatpush1.msra.mxu0 %v154
    %959 = vmatprep.subr.mxu0 0.0
    %960 = vmatpush1.msra.mxu0 %v155
    %961 = vmatprep.subr.mxu0 0.0
    %962 = vmatpush1.msra.mxu0 0.0
    %963 = vmatprep.subr.mxu0 0.0
    %964 = vmatpush1.msra.mxu0 0.0
    %965 = vmatprep.subr.mxu0 0.0
    %966 = vmatpush1.msra.mxu0 0.0
    %967 = vmatprep.subr.mxu0 0.0
    %968 = vmatpush1.msra.mxu0 0.0
    %969 = vmatprep.subr.mxu0 0.0
    %970 = vmatpush1.msra.mxu0 0.0
    %971 = vmatprep.subr.mxu0 0.0
    %972 = vmatpush1.msra.mxu0 0.0
    %973 = vmatprep.subr.mxu0 0.0
    %974 = vmatpush1.msra.mxu0 0.0
    %975 = vmatprep.subr.mxu0 0.0
    %976 = vmatpush1.msra.mxu0 0.0
    %977 = vmatprep.subr.mxu0 0.0
    %978 = vmatpush1.msra.mxu0 0.0
    %979 = vmatprep.subr.mxu0 0.0
    %980 = vmatpush1.msra.mxu0 0.0
    %981 = vmatprep.subr.mxu0 0.0
    %982 = vmatpush1.msra.mxu0 0.0
    %983 = vmatprep.subr.mxu0 0.0
    %984 = vmatpush1.msra.mxu0 0.0
    %985 = vmatprep.subr.mxu0 0.0
    %986 = vmatpush1.msra.mxu0 0.0
    %987 = vmatprep.subr.mxu0 0.0
    %988 = vmatpush1.msra.mxu0 0.0
    %989 = vmatprep.subr.mxu0 0.0
    %990 = vmatpush1.msra.mxu0 0.0
    %991 = vmatprep.subr.mxu0 0.0
    %992 = vmatpush1.msra.mxu0 0.0
    %993 = vmatprep.subr.mxu0 0.0
    %994 = vmatpush1.msra.mxu0 0.0
    %995 = vmatprep.subr.mxu0 0.0
    %996 = vmatpush1.msra.mxu0 0.0
    %997 = vmatprep.subr.mxu0 0.0
    %998 = vmatpush1.msra.mxu0 0.0
    %999 = vmatprep.subr.mxu0 0.0
    %1000 = vmatpush1.msra.mxu0 0.0
    %1001 = vmatprep.subr.mxu0 0.0
    %1002 = vmatpush1.msra.mxu0 0.0
    %1003 = vmatprep.subr.mxu0 0.0
    %1004 = vmatpush1.msra.mxu0 0.0
    %1005 = vmatprep.subr.mxu0 0.0
    %1006 = vmatpush1.msra.mxu0 0.0
    %1007 = vmatprep.subr.mxu0 0.0
    %1008 = vmatpush1.msra.mxu0 0.0
    %1009 = vmatprep.subr.mxu0 0.0
    %1010 = vmatpush1.msra.mxu0 0.0
    %1011 = vmatprep.subr.mxu0 0.0
    %1012 = vmatpush1.msra.mxu0 0.0
    %1013 = vmatprep.subr.mxu0 0.0
    %1014 = vmatpush1.msra.mxu0 0.0
    %1015 = vmatprep.subr.mxu0 0.0
    %1016 = vmatpush1.msra.mxu0 0.0
    %1017 = vmatprep.mubr.f32.mxu0 0.0
    %1018 = vmatmul.mubr.f32.gmra.mrb[0].mxu0 %v951
    %v1019 = vpop.f32.mrb[0].mxu0
    %v1020 = vadd.f32 0.0, %v1019
    %v1021 = vpop.f32.mrb[0].mxu0
    %1022 = vdwg.mxu0
    %v1024 = vrot.slane %v1020, 2
    %v1026 = vadd.f32 %v149, %v1024
    %v1027 = vxor.u32 %v1026, 2147483648
    %v1028 = vmul.f32 %v1027, 1.442695
    %v1029 = vpow.pop %v1028
    %v1030 = vadd.f32 %v1029, 1.0
    %v1031 = vrcp.pop %v1030
    %v1032 = vmul.f32 1.0, %v1031
    %v1033 = vtanh.pop %v1026
    %v1035 = vrot.slane %v935, 6
    %v1037 = vmul.f32 %v1032, %v1035
    %1039 = vrot.lane.b32.xlu0 %v1033, 64
    %v1040 = vpop.permute.xlu0 %1039
    %v1042 = vmul.f32 %v1032, %v1040
    %1044 = vrot.lane.b32.xlu0 %v1042, 32
    %v1045 = vpop.permute.xlu0 %1044
    %v1047 = vadd.f32 %v1037, %v1045
    %v1048 = vtanh.pop %v1047
    %1050 = vrot.lane.b32.xlu0 %v1048, 64
    %v1051 = vpop.permute.xlu0 %1050
    %v1053 = vmul.f32 %v1032, %v1051
    %vm1054 = vcmp.eq.s32.totalorder %v165, 7
    %v1055 = vsel %vm1054, 1, 0
    %vm1056 = vcmp.eq.s32.totalorder %v1055, 1
    %v1058 = vrot.slane %v1053, 6
    %1059 = vrot.lane.b32.xlu0 %v1058, 32
    %v1060 = vpop.permute.xlu0 %1059
    %v1062 = vsel %vm1056, %v1060, %v950
    %v1063 = vld [vmem:[%s5] sm:$0xff]
    %v1064 = vld [vmem:[%s5 + $0x8] sm:$0xff]
    %v1065 = vld [vmem:[%s5 + $0x10] sm:$0xff]
    %v1066 = vld [vmem:[%s5 + $0x18] sm:$0xff]
    %v1067 = vld [vmem:[%s6] sm:$0x1]
    %v1069 = vlaneseq
    %v1070 = vshrl.u32 %v1069, 7
    %v1071 = vsub.s32 0, %v1070
    %v1072 = vrot.slane %v1067, %v1071
    %v1075 = vsel %vm166, %v1062, 0
    %1077 = vmatprep.subr.mxu0 0.0
    %1078 = vmatpush1.msra.mxu0 %v1063
    %1079 = vmatprep.subr.mxu0 0.0
    %1080 = vmatpush1.msra.mxu0 %v1064
    %1081 = vmatprep.subr.mxu0 0.0
    %1082 = vmatpush1.msra.mxu0 %v1065
    %1083 = vmatprep.subr.mxu0 0.0
    %1084 = vmatpush1.msra.mxu0 %v1066
    %1085 = vmatprep.subr.mxu0 0.0
    %1086 = vmatpush1.msra.mxu0 0.0
    %1087 = vmatprep.subr.mxu0 0.0
    %1088 = vmatpush1.msra.mxu0 0.0
    %1089 = vmatprep.subr.mxu0 0.0
    %1090 = vmatpush1.msra.mxu0 0.0
    %1091 = vmatprep.subr.mxu0 0.0
    %1092 = vmatpush1.msra.mxu0 0.0
    %1093 = vmatprep.subr.mxu0 0.0
    %1094 = vmatpush1.msra.mxu0 0.0
    %1095 = vmatprep.subr.mxu0 0.0
    %1096 = vmatpush1.msra.mxu0 0.0
    %1097 = vmatprep.subr.mxu0 0.0
    %1098 = vmatpush1.msra.mxu0 0.0
    %1099 = vmatprep.subr.mxu0 0.0
    %1100 = vmatpush1.msra.mxu0 0.0
    %1101 = vmatprep.subr.mxu0 0.0
    %1102 = vmatpush1.msra.mxu0 0.0
    %1103 = vmatprep.subr.mxu0 0.0
    %1104 = vmatpush1.msra.mxu0 0.0
    %1105 = vmatprep.subr.mxu0 0.0
    %1106 = vmatpush1.msra.mxu0 0.0
    %1107 = vmatprep.subr.mxu0 0.0
    %1108 = vmatpush1.msra.mxu0 0.0
    %1109 = vmatprep.subr.mxu0 0.0
    %1110 = vmatpush1.msra.mxu0 0.0
    %1111 = vmatprep.subr.mxu0 0.0
    %1112 = vmatpush1.msra.mxu0 0.0
    %1113 = vmatprep.subr.mxu0 0.0
    %1114 = vmatpush1.msra.mxu0 0.0
    %1115 = vmatprep.subr.mxu0 0.0
    %1116 = vmatpush1.msra.mxu0 0.0
    %1117 = vmatprep.subr.mxu0 0.0
    %1118 = vmatpush1.msra.mxu0 0.0
    %1119 = vmatprep.subr.mxu0 0.0
    %1120 = vmatpush1.msra.mxu0 0.0
    %1121 = vmatprep.subr.mxu0 0.0
    %1122 = vmatpush1.msra.mxu0 0.0
    %1123 = vmatprep.subr.mxu0 0.0
    %1124 = vmatpush1.msra.mxu0 0.0
    %1125 = vmatprep.subr.mxu0 0.0
    %1126 = vmatpush1.msra.mxu0 0.0
    %1127 = vmatprep.subr.mxu0 0.0
    %1128 = vmatpush1.msra.mxu0 0.0
    %1129 = vmatprep.subr.mxu0 0.0
    %1130 = vmatpush1.msra.mxu0 0.0
    %1131 = vmatprep.subr.mxu0 0.0
    %1132 = vmatpush1.msra.mxu0 0.0
    %1133 = vmatprep.subr.mxu0 0.0
    %1134 = vmatpush1.msra.mxu0 0.0
    %1135 = vmatprep.subr.mxu0 0.0
    %1136 = vmatpush1.msra.mxu0 0.0
    %1137 = vmatprep.subr.mxu0 0.0
    %1138 = vmatpush1.msra.mxu0 0.0
    %1139 = vmatprep.subr.mxu0 0.0
    %1140 = vmatpush1.msra.mxu0 0.0
    %1141 = vmatprep.mubr.f32.mxu0 0.0
    %1142 = vmatmul.mubr.f32.gmra.mrb[0].mxu0 %v1075
    %v1143 = vpop.f32.mrb[0].mxu0
    %v1144 = vadd.f32 %v1072, %v1143
    %v1145 = vpop.f32.mrb[0].mxu0
    %1146 = vdwg.mxu0
    %v1147 = vmul.f32 %v1144, 0.2
    %v1148 = vxor.u32 %v1147, 2147483648
    %v1149 = vmul.f32 %v1148, 1.442695
    %v1150 = vpow.pop %v1149
    %v1151 = vadd.f32 %v1150, 1.0
    %v1152 = vrcp.pop %v1151
    %v1153 = vmul.f32 1.0, %v1152
    %vm1154 = vcmask 9216
    %1155 = vst.msk [vmem:[#allocation9] sm:$0x3] %vm1154, %v1153
    // Predicated region
    $region34: #{tpu_custom_call.1} parent=1 // pred_check
      _
    $region35: #{tpu_custom_call.1} parent=1 // pred_check_branch
      %1157 = sbr.rel (0) target = $region37
    $region36: #{tpu_custom_call.1} parent=1 // pred_region
      %s1159 = ssub.s32 32, 32
      %1160 = vsyncadd [#allocation6], %s1159
      %s1162 = sshll.u32 [#allocation9], 4
      %s1163 = int_to_ptr.vmem [resolvable:$true] %s1162
      %1165 = dma.vmem_to_hbm [thread:$0]  %s1163, 32, %s7, [#allocation6]
    $region37: #{tpu_custom_call.1} parent=1 // pred_fallthru
      _
    // Predicated region
    $region38: #{tpu_custom_call.1} parent=1 // pred_check
      _
    $region39: #{tpu_custom_call.1} parent=1 // pred_check_branch
      %1167 = sbr.rel (0) target = $region41
    $region40: #{tpu_custom_call.1} parent=1 // pred_region
      %1168 = dma.done [#allocation6], 32
    $region41: #{tpu_custom_call.1} parent=1 // pred_fallthru
      _
    %1169 = vsyncpa [#allocation5], 1
    %1170 = vsyncpa [#allocation8], 1
    %1171 = vsyncpa [#allocation6], 1

</llo_original>
